<compile_context>
chip_gen: v6e
topology: v6e:2x2x1
jax: 0.10.0
libtpu: 0.0.40
codegen_flags: <defaults>
</compile_context>

<pallas_src>
import functools

import numpy as np
import jax
import jax.numpy as jnp
from jax.experimental import pallas as pl
from jax.experimental.pallas import tpu as pltpu


# --------------------------------------------------------------------------
# Constant 0/1 "spatial band" tensor: encodes the (kh, kw) tap pattern of a
# SAME KxK 2-D conv over an H*W-flattened plane (zero padding is implicit:
# out-of-range taps simply have no entry).
# --------------------------------------------------------------------------
@functools.lru_cache(maxsize=None)
def _spatial_band(K, H, W):
    p = K // 2
    S = np.zeros((K, K, H * W, H * W), np.float32)
    for kh in range(K):
        for kw in range(K):
            for h in range(H):
                hp = h + kh - p
                if hp < 0 or hp >= H:
                    continue
                for w in range(W):
                    wp = w + kw - p
                    if wp < 0 or wp >= W:
                        continue
                    S[kh, kw, hp * W + wp, h * W + w] = 1.0
    return S


# --------------------------------------------------------------------------
# Fused BasicBlock kernel (one batch element per grid step, everything in
# lane-dense (D, C*H*W) layout, all intermediates register-resident)
# --------------------------------------------------------------------------
def _gam_block_kernel(x_ref, w1_ref, w2_ref, wsa_ref, b1_ref, b2_ref,
                      caw1_ref, caw2_ref, o_ref, *, C, D, HW, Cr):
    f32 = jnp.float32
    CHW = C * HW

    x = x_ref[0]                                            # (D, CHW)
    zrow = jnp.zeros((1, CHW), f32)

    # ---- stage 1: conv1 (3x3x3, BN1 scale folded) + BN1 bias + ReLU -------
    xpad = jnp.concatenate([zrow, x, zrow], axis=0)         # (D+2, CHW)
    a1 = jnp.dot(xpad[0:D], w1_ref[0], preferred_element_type=f32)
    for kd in range(1, 3):                                  # static -> unrolled
        a1 = a1 + jnp.dot(xpad[kd:kd + D], w1_ref[kd],
                          preferred_element_type=f32)
    y1 = jnp.maximum(a1 + b1_ref[...], 0.0)                 # (D, CHW)

    # ---- stage 2: conv2 (3x3x3, BN2 scale folded) + BN2 bias ---------------
    y1pad = jnp.concatenate([zrow, y1, zrow], axis=0)       # (D+2, CHW)
    a2 = jnp.dot(y1pad[0:D], w2_ref[0], preferred_element_type=f32)
    for kd in range(1, 3):
        a2 = a2 + jnp.dot(y1pad[kd:kd + D], w2_ref[kd],
                          preferred_element_type=f32)
    y2 = a2 + b2_ref[...]                                   # (D, CHW)

    # ---- stage 3: channel attention = sigmoid(MLP(avg) + MLP(max)) --------
    # Per-channel blocks are contiguous 64-lane spans in the channel-major
    # packing, so the global pools are plain full reductions per block.
    yb = [y2[:, c * HW:(c + 1) * HW] for c in range(C)]     # each (D, HW)
    caw1 = caw1_ref[...]                                    # (C, Cr)
    caw2 = caw2_ref[...]                                    # (Cr, C)
    inv_dhw = 1.0 / float(D * HW)
    h_avg = jnp.zeros((1, Cr), f32)
    h_max = jnp.zeros((1, Cr), f32)
    for c in range(C):
        h_avg = h_avg + (jnp.sum(yb[c], keepdims=True) * inv_dhw) * caw1[c:c + 1, :]
        h_max = h_max + jnp.max(yb[c], keepdims=True) * caw1[c:c + 1, :]
    h_sum = jnp.maximum(h_avg, 0.0) + jnp.maximum(h_max, 0.0)   # (1, Cr)
    ca_logit = jnp.zeros((1, C), f32)
    for r in range(Cr):
        ca_logit = ca_logit + h_sum[:, r:r + 1] * caw2[r:r + 1, :]
    ca = jax.nn.sigmoid(ca_logit)                           # (1, C)

    # ---- stage 4: channel gating + per-voxel channel mean/max maps --------
    gb = [yb[c] * ca[:, c:c + 1] for c in range(C)]         # gated blocks, reused below
    ssum = gb[0]
    smax = gb[0]
    for c in range(1, C):
        ssum = ssum + gb[c]
        smax = jnp.maximum(smax, gb[c])
    spmap = jnp.concatenate([ssum * (1.0 / C), smax], axis=-1)   # (D, 2*HW)

    # ---- stage 5: 7x7x7 spatial-attention conv (7 banded matmuls) ---------
    zsa = jnp.zeros((3, 2 * HW), f32)
    sppad = jnp.concatenate([zsa, spmap, zsa], axis=0)      # (D+6, 2*HW)
    sa_logit = jnp.dot(sppad[0:D], wsa_ref[0], preferred_element_type=f32)
    for kd in range(1, 7):
        sa_logit = sa_logit + jnp.dot(sppad[kd:kd + D], wsa_ref[kd],
                                      preferred_element_type=f32)
    sa = jax.nn.sigmoid(sa_logit)                           # (D, HW)

    # ---- stage 6: relu(gated * sa + residual), one lane-dense store -------
    outb = [jnp.maximum(gb[c] * sa + x[:, c * HW:(c + 1) * HW], 0.0)
            for c in range(C)]
    o_ref[0] = jnp.concatenate(outb, axis=-1)               # (D, CHW) dense store


# --------------------------------------------------------------------------
# Public wrapper (PyTorch NCDHW layout in/out)
# --------------------------------------------------------------------------
def basic_block_forward(x_ncdhw, p):
    N, C, D, H, W = x_ncdhw.shape
    HW = H * W
    CHW = C * HW
    Cr = p["ca_w1"].shape[1]
    f32 = jnp.float32

    S3 = _spatial_band(3, H, W)
    S7 = _spatial_band(7, H, W)

    def band(wt, S):
        # wt: (K, K, K, Cin, Cout) DHWIO weights  ->  (K, Cin*HW, Cout*HW)
        # banded matrices encoding the (kh, kw, ci) taps + H/W zero padding.
        K = wt.shape[0]
        Ci, Co = wt.shape[3], wt.shape[4]
        B = jnp.einsum('dhwio,hwpq->dipoq', wt.astype(f32), jnp.asarray(S))
        return B.reshape(K, Ci * HW, Co * HW)

    # Fold the BN scales into the conv weight columns (inference-mode fold).
    w1b = band(p["conv1_w"], S3) * jnp.repeat(p["bn1_scale"].astype(f32), HW)[None, None, :]
    w2b = band(p["conv2_w"], S3) * jnp.repeat(p["bn2_scale"].astype(f32), HW)[None, None, :]
    wsab = band(p["sa_w"], S7)
    b1v = jnp.repeat(p["bn1_bias"].astype(f32), HW)[None, :]
    b2v = jnp.repeat(p["bn2_bias"].astype(f32), HW)[None, :]

    # Channel-major lane packing: lane = c*H*W + h*W + w  (native NCDHW order)
    x_packed = jnp.transpose(x_ncdhw.astype(f32), (0, 2, 1, 3, 4)).reshape(N, D, CHW)

    kernel = functools.partial(_gam_block_kernel, C=C, D=D, HW=HW, Cr=Cr)

    out_packed = pl.pallas_call(
        kernel,
        out_shape=jax.ShapeDtypeStruct((N, D, CHW), f32),
        grid=(N,),
        in_specs=[
            pl.BlockSpec((1, D, CHW), lambda n: (n, 0, 0)),        # x (per batch)
            pl.BlockSpec((3, CHW, CHW), lambda n: (0, 0, 0)),      # conv1 band (BN1-folded)
            pl.BlockSpec((3, CHW, CHW), lambda n: (0, 0, 0)),      # conv2 band (BN2-folded)
            pl.BlockSpec((7, 2 * HW, HW), lambda n: (0, 0, 0)),    # SA conv band
            pl.BlockSpec((1, CHW), lambda n: (0, 0)),              # bn1 bias vec
            pl.BlockSpec((1, CHW), lambda n: (0, 0)),              # bn2 bias vec
            pl.BlockSpec((C, Cr), lambda n: (0, 0)),               # ca_w1
            pl.BlockSpec((Cr, C), lambda n: (0, 0)),               # ca_w2
        ],
        out_specs=pl.BlockSpec((1, D, CHW), lambda n: (n, 0, 0)),
        compiler_params=pltpu.CompilerParams(
            dimension_semantics=("parallel",),
            vmem_limit_bytes=32 * 1024 * 1024),
    )(x_packed, w1b, w2b, wsab, b1v, b2v,
      p["ca_w1"].astype(f32), p["ca_w2"].astype(f32))

    return jnp.transpose(out_packed.reshape(N, D, C, H, W), (0, 2, 1, 3, 4))


# --------------------------------------------------------------------------
# Parameters (deterministic, synthetic) and a pure-JAX reference
# --------------------------------------------------------------------------
def init_params(key, inplanes, planes, ratio=4, eps=1e-5):
    ks = jax.random.split(key, 13)

    def nrm(k, shape, s=0.1):
        return (s * jax.random.normal(k, shape)).astype(jnp.float32)

    def bn_fold(kg, kb, km, kv, c):
        gamma = 1.0 + nrm(kg, (c,))
        beta = nrm(kb, (c,))
        mean = nrm(km, (c,))
        var = jnp.abs(nrm(kv, (c,), 1.0)) + 0.5
        scale = gamma / jnp.sqrt(var + eps)
        bias = beta - mean * scale
        return scale, bias

    bn1_scale, bn1_bias = bn_fold(ks[2], ks[3], ks[4], ks[5], planes)
    bn2_scale, bn2_bias = bn_fold(ks[6], ks[7], ks[8], ks[9], planes)
    return {
        "conv1_w": nrm(ks[0], (3, 3, 3, inplanes, planes)),
        "conv2_w": nrm(ks[1], (3, 3, 3, planes, planes)),
        "bn1_scale": bn1_scale, "bn1_bias": bn1_bias,
        "bn2_scale": bn2_scale, "bn2_bias": bn2_bias,
        "ca_w1": nrm(ks[10], (planes, planes // ratio)),
        "ca_w2": nrm(ks[11], (planes // ratio, planes)),
        "sa_w": nrm(ks[12], (7, 7, 7, 2, 1)),
    }


def reference_forward(x_ncdhw, p):
    x = jnp.transpose(x_ncdhw, (0, 2, 3, 4, 1))

    def conv(v, w):
        return jax.lax.conv_general_dilated(
            v, w, (1, 1, 1), "SAME",
            dimension_numbers=("NDHWC", "DHWIO", "NDHWC"),
            precision=jax.lax.Precision.HIGHEST)

    out = jax.nn.relu(conv(x, p["conv1_w"]) * p["bn1_scale"] + p["bn1_bias"])
    out = conv(out, p["conv2_w"]) * p["bn2_scale"] + p["bn2_bias"]
    avg = out.mean(axis=(1, 2, 3))
    mx = out.max(axis=(1, 2, 3))

    def mlp(v):
        return jax.nn.relu(v @ p["ca_w1"]) @ p["ca_w2"]

    ca = jax.nn.sigmoid(mlp(avg) + mlp(mx))[:, None, None, None, :]
    out = out * ca
    stats = jnp.concatenate([out.mean(axis=-1, keepdims=True),
                             out.max(axis=-1, keepdims=True)], axis=-1)
    sa = jax.nn.sigmoid(conv(stats, p["sa_w"]))
    out = jax.nn.relu(out * sa + x)
    return jnp.transpose(out, (0, 4, 1, 2, 3))


if __name__ == "__main__":
    key = jax.random.PRNGKey(0)
    k_in, k_par = jax.random.split(key)

    # PyTorch module input layout: NCDHW
    N, C, D, H, W = 2, 4, 8, 8, 8
    x = jax.random.normal(k_in, (N, C, D, H, W), dtype=jnp.float32)
    params = init_params(k_par, inplanes=C, planes=C)

    fwd = jax.jit(basic_block_forward)
    out = jax.block_until_ready(fwd(x, params))
    assert out.shape == (N, C, D, H, W)

    ref = reference_forward(x, params)
    np.testing.assert_allclose(np.asarray(out), np.asarray(ref),
                               atol=2e-4, rtol=2e-4)
    print("KERNEL_OK")
</pallas_src>

<mosaic_0001>
module attributes {stable_mosaic.version = 11 : i64} {
  func.func @_gam_block_kernel(%arg0: i32, %arg1: memref<1x8x256xf32, #tpu.memory_space<vmem>>, %arg2: memref<3x256x256xf32, #tpu.memory_space<vmem>>, %arg3: memref<3x256x256xf32, #tpu.memory_space<vmem>>, %arg4: memref<7x128x64xf32, #tpu.memory_space<vmem>>, %arg5: memref<1x256xf32, #tpu.memory_space<vmem>>, %arg6: memref<1x256xf32, #tpu.memory_space<vmem>>, %arg7: memref<4x1xf32, #tpu.memory_space<vmem>>, %arg8: memref<1x4xf32, #tpu.memory_space<vmem>>, %arg9: memref<1x8x256xf32, #tpu.memory_space<vmem>>) attributes {dimension_semantics = [#tpu.dimension_semantics<parallel>], iteration_bounds = array<i64: 2>, scalar_prefetch = 0 : i64, scratch_operands = 0 : i64, tpu.core_type = #tpu.core_type<tc>, window_params = [{transform_indices = @transform_0, window_bounds = array<i64: 1, 8, 256>}, {pipeline_mode = #tpu.pipeline_mode<synchronous>, transform_indices = @transform_1, window_bounds = array<i64: 3, 256, 256>}, {pipeline_mode = #tpu.pipeline_mode<synchronous>, transform_indices = @transform_2, window_bounds = array<i64: 3, 256, 256>}, {pipeline_mode = #tpu.pipeline_mode<synchronous>, transform_indices = @transform_3, window_bounds = array<i64: 7, 128, 64>}, {pipeline_mode = #tpu.pipeline_mode<synchronous>, transform_indices = @transform_4, window_bounds = array<i64: 1, 256>}, {pipeline_mode = #tpu.pipeline_mode<synchronous>, transform_indices = @transform_5, window_bounds = array<i64: 1, 256>}, {pipeline_mode = #tpu.pipeline_mode<synchronous>, transform_indices = @transform_6, window_bounds = array<i64: 4, 1>}, {pipeline_mode = #tpu.pipeline_mode<synchronous>, transform_indices = @transform_7, window_bounds = array<i64: 1, 4>}, {transform_indices = @transform_8, window_bounds = array<i64: 1, 8, 256>}]} {
    %c0 = arith.constant 0 : index
    %c0_0 = arith.constant 0 : index
    %c0_1 = arith.constant 0 : index
    %0 = vector.load %arg1[%c0, %c0_0, %c0_1] : memref<1x8x256xf32, #tpu.memory_space<vmem>>, vector<1x8x256xf32>
    %1 = vector.shape_cast %0 : vector<1x8x256xf32> to vector<8x256xf32>
    %cst = arith.constant 0.000000e+00 : f32
    %2 = vector.broadcast %cst : f32 to vector<1x256xf32>
    %3 = tpu.concatenate %2, %1, %2 in 0 : vector<1x256xf32>, vector<8x256xf32>, vector<1x256xf32> -> vector<10x256xf32>
    %4 = vector.extract_strided_slice %3 {offsets = [0, 0], sizes = [8, 256], strides = [1, 1]} : vector<10x256xf32> to vector<8x256xf32>
    %c0_2 = arith.constant 0 : index
    %c0_3 = arith.constant 0 : index
    %c0_4 = arith.constant 0 : index
    %5 = vector.load %arg2[%c0_2, %c0_3, %c0_4] : memref<3x256x256xf32, #tpu.memory_space<vmem>>, vector<1x256x256xf32>
    %6 = vector.shape_cast %5 : vector<1x256x256xf32> to vector<256x256xf32>
    %cst_5 = arith.constant dense<0.000000e+00> : vector<8x256xf32>
    %7 = tpu.matmul %4, %6, %cst_5 {dimension_numbers = #tpu.dot_dimension_numbers<[1], [0], [0], [1], [0, 0, 1, 1], [], []>} : vector<8x256xf32>, vector<256x256xf32>, vector<8x256xf32> -> vector<8x256xf32>
    %8 = vector.extract_strided_slice %3 {offsets = [1, 0], sizes = [8, 256], strides = [1, 1]} : vector<10x256xf32> to vector<8x256xf32>
    %c1 = arith.constant 1 : index
    %c0_6 = arith.constant 0 : index
    %c0_7 = arith.constant 0 : index
    %9 = vector.load %arg2[%c1, %c0_6, %c0_7] : memref<3x256x256xf32, #tpu.memory_space<vmem>>, vector<1x256x256xf32>
    %10 = vector.shape_cast %9 : vector<1x256x256xf32> to vector<256x256xf32>
    %cst_8 = arith.constant dense<0.000000e+00> : vector<8x256xf32>
    %11 = tpu.matmul %8, %10, %cst_8 {dimension_numbers = #tpu.dot_dimension_numbers<[1], [0], [0], [1], [0, 0, 1, 1], [], []>} : vector<8x256xf32>, vector<256x256xf32>, vector<8x256xf32> -> vector<8x256xf32>
    %12 = arith.addf %7, %11 : vector<8x256xf32>
    %13 = vector.extract_strided_slice %3 {offsets = [2, 0], sizes = [8, 256], strides = [1, 1]} : vector<10x256xf32> to vector<8x256xf32>
    %c2 = arith.constant 2 : index
    %c0_9 = arith.constant 0 : index
    %c0_10 = arith.constant 0 : index
    %14 = vector.load %arg2[%c2, %c0_9, %c0_10] : memref<3x256x256xf32, #tpu.memory_space<vmem>>, vector<1x256x256xf32>
    %15 = vector.shape_cast %14 : vector<1x256x256xf32> to vector<256x256xf32>
    %cst_11 = arith.constant dense<0.000000e+00> : vector<8x256xf32>
    %16 = tpu.matmul %13, %15, %cst_11 {dimension_numbers = #tpu.dot_dimension_numbers<[1], [0], [0], [1], [0, 0, 1, 1], [], []>} : vector<8x256xf32>, vector<256x256xf32>, vector<8x256xf32> -> vector<8x256xf32>
    %17 = arith.addf %12, %16 : vector<8x256xf32>
    %c0_12 = arith.constant 0 : index
    %c0_13 = arith.constant 0 : index
    %18 = vector.load %arg5[%c0_12, %c0_13] : memref<1x256xf32, #tpu.memory_space<vmem>>, vector<1x256xf32>
    %19 = vector.broadcast %18 : vector<1x256xf32> to vector<8x256xf32>
    %20 = arith.addf %17, %19 : vector<8x256xf32>
    %cst_14 = arith.constant 0.000000e+00 : f32
    %21 = vector.broadcast %cst_14 : f32 to vector<8x256xf32>
    %22 = arith.maximumf %20, %21 : vector<8x256xf32>
    %23 = tpu.concatenate %2, %22, %2 in 0 : vector<1x256xf32>, vector<8x256xf32>, vector<1x256xf32> -> vector<10x256xf32>
    %24 = vector.extract_strided_slice %23 {offsets = [0, 0], sizes = [8, 256], strides = [1, 1]} : vector<10x256xf32> to vector<8x256xf32>
    %c0_15 = arith.constant 0 : index
    %c0_16 = arith.constant 0 : index
    %c0_17 = arith.constant 0 : index
    %25 = vector.load %arg3[%c0_15, %c0_16, %c0_17] : memref<3x256x256xf32, #tpu.memory_space<vmem>>, vector<1x256x256xf32>
    %26 = vector.shape_cast %25 : vector<1x256x256xf32> to vector<256x256xf32>
    %cst_18 = arith.constant dense<0.000000e+00> : vector<8x256xf32>
    %27 = tpu.matmul %24, %26, %cst_18 {dimension_numbers = #tpu.dot_dimension_numbers<[1], [0], [0], [1], [0, 0, 1, 1], [], []>} : vector<8x256xf32>, vector<256x256xf32>, vector<8x256xf32> -> vector<8x256xf32>
    %28 = vector.extract_strided_slice %23 {offsets = [1, 0], sizes = [8, 256], strides = [1, 1]} : vector<10x256xf32> to vector<8x256xf32>
    %c1_19 = arith.constant 1 : index
    %c0_20 = arith.constant 0 : index
    %c0_21 = arith.constant 0 : index
    %29 = vector.load %arg3[%c1_19, %c0_20, %c0_21] : memref<3x256x256xf32, #tpu.memory_space<vmem>>, vector<1x256x256xf32>
    %30 = vector.shape_cast %29 : vector<1x256x256xf32> to vector<256x256xf32>
    %cst_22 = arith.constant dense<0.000000e+00> : vector<8x256xf32>
    %31 = tpu.matmul %28, %30, %cst_22 {dimension_numbers = #tpu.dot_dimension_numbers<[1], [0], [0], [1], [0, 0, 1, 1], [], []>} : vector<8x256xf32>, vector<256x256xf32>, vector<8x256xf32> -> vector<8x256xf32>
    %32 = arith.addf %27, %31 : vector<8x256xf32>
    %33 = vector.extract_strided_slice %23 {offsets = [2, 0], sizes = [8, 256], strides = [1, 1]} : vector<10x256xf32> to vector<8x256xf32>
    %c2_23 = arith.constant 2 : index
    %c0_24 = arith.constant 0 : index
    %c0_25 = arith.constant 0 : index
    %34 = vector.load %arg3[%c2_23, %c0_24, %c0_25] : memref<3x256x256xf32, #tpu.memory_space<vmem>>, vector<1x256x256xf32>
    %35 = vector.shape_cast %34 : vector<1x256x256xf32> to vector<256x256xf32>
    %cst_26 = arith.constant dense<0.000000e+00> : vector<8x256xf32>
    %36 = tpu.matmul %33, %35, %cst_26 {dimension_numbers = #tpu.dot_dimension_numbers<[1], [0], [0], [1], [0, 0, 1, 1], [], []>} : vector<8x256xf32>, vector<256x256xf32>, vector<8x256xf32> -> vector<8x256xf32>
    %37 = arith.addf %32, %36 : vector<8x256xf32>
    %c0_27 = arith.constant 0 : index
    %c0_28 = arith.constant 0 : index
    %38 = vector.load %arg6[%c0_27, %c0_28] : memref<1x256xf32, #tpu.memory_space<vmem>>, vector<1x256xf32>
    %39 = vector.broadcast %38 : vector<1x256xf32> to vector<8x256xf32>
    %40 = arith.addf %37, %39 : vector<8x256xf32>
    %41 = vector.extract_strided_slice %40 {offsets = [0, 0], sizes = [8, 64], strides = [1, 1]} : vector<8x256xf32> to vector<8x64xf32>
    %42 = vector.extract_strided_slice %40 {offsets = [0, 64], sizes = [8, 64], strides = [1, 1]} : vector<8x256xf32> to vector<8x64xf32>
    %43 = vector.extract_strided_slice %40 {offsets = [0, 128], sizes = [8, 64], strides = [1, 1]} : vector<8x256xf32> to vector<8x64xf32>
    %44 = vector.extract_strided_slice %40 {offsets = [0, 192], sizes = [8, 64], strides = [1, 1]} : vector<8x256xf32> to vector<8x64xf32>
    %c0_29 = arith.constant 0 : index
    %c0_30 = arith.constant 0 : index
    %45 = vector.load %arg7[%c0_29, %c0_30] : memref<4x1xf32, #tpu.memory_space<vmem>>, vector<4x1xf32>
    %c0_31 = arith.constant 0 : index
    %c0_32 = arith.constant 0 : index
    %46 = vector.load %arg8[%c0_31, %c0_32] : memref<1x4xf32, #tpu.memory_space<vmem>>, vector<1x4xf32>
    %cst_33 = arith.constant 0.000000e+00 : f32
    %47 = vector.broadcast %cst_33 : f32 to vector<1x1xf32>
    %cst_34 = arith.constant 0.000000e+00 : f32
    %48 = vector.broadcast %cst_34 : f32 to vector<1x1xf32>
    %49 = vector.shape_cast %41 : vector<8x64xf32> to vector<1x8x64xf32>
    %cst_35 = arith.constant dense<0.000000e+00> : vector<1xf32>
    %50 = vector.multi_reduction <add>, %49, %cst_35 [1, 2] : vector<1x8x64xf32> to vector<1xf32>
    %51 = vector.shape_cast %50 : vector<1xf32> to vector<1x1x1xf32>
    %52 = vector.extract %51[0, 0, 0] : f32 from vector<1x1x1xf32>
    %53 = vector.broadcast %52 : f32 to vector<1x1xf32>
    %cst_36 = arith.constant 0.001953125 : f32
    %54 = vector.broadcast %cst_36 : f32 to vector<1x1xf32>
    %55 = arith.mulf %53, %54 : vector<1x1xf32>
    %56 = vector.extract_strided_slice %45 {offsets = [0, 0], sizes = [1, 1], strides = [1, 1]} : vector<4x1xf32> to vector<1x1xf32>
    %57 = arith.mulf %55, %56 : vector<1x1xf32>
    %58 = arith.addf %47, %57 : vector<1x1xf32>
    %59 = vector.shape_cast %41 : vector<8x64xf32> to vector<1x8x64xf32>
    %cst_37 = arith.constant dense<0xFF800000> : vector<1xf32>
    %60 = vector.multi_reduction <maximumf>, %59, %cst_37 [1, 2] : vector<1x8x64xf32> to vector<1xf32>
    %61 = vector.shape_cast %60 : vector<1xf32> to vector<1x1x1xf32>
    %62 = vector.extract %61[0, 0, 0] : f32 from vector<1x1x1xf32>
    %63 = vector.broadcast %62 : f32 to vector<1x1xf32>
    %64 = vector.extract_strided_slice %45 {offsets = [0, 0], sizes = [1, 1], strides = [1, 1]} : vector<4x1xf32> to vector<1x1xf32>
    %65 = arith.mulf %63, %64 : vector<1x1xf32>
    %66 = arith.addf %48, %65 : vector<1x1xf32>
    %67 = vector.shape_cast %42 : vector<8x64xf32> to vector<1x8x64xf32>
    %cst_38 = arith.constant dense<0.000000e+00> : vector<1xf32>
    %68 = vector.multi_reduction <add>, %67, %cst_38 [1, 2] : vector<1x8x64xf32> to vector<1xf32>
    %69 = vector.shape_cast %68 : vector<1xf32> to vector<1x1x1xf32>
    %70 = vector.extract %69[0, 0, 0] : f32 from vector<1x1x1xf32>
    %71 = vector.broadcast %70 : f32 to vector<1x1xf32>
    %cst_39 = arith.constant 0.001953125 : f32
    %72 = vector.broadcast %cst_39 : f32 to vector<1x1xf32>
    %73 = arith.mulf %71, %72 : vector<1x1xf32>
    %74 = vector.extract_strided_slice %45 {offsets = [1, 0], sizes = [1, 1], strides = [1, 1]} : vector<4x1xf32> to vector<1x1xf32>
    %75 = arith.mulf %73, %74 : vector<1x1xf32>
    %76 = arith.addf %58, %75 : vector<1x1xf32>
    %77 = vector.shape_cast %42 : vector<8x64xf32> to vector<1x8x64xf32>
    %cst_40 = arith.constant dense<0xFF800000> : vector<1xf32>
    %78 = vector.multi_reduction <maximumf>, %77, %cst_40 [1, 2] : vector<1x8x64xf32> to vector<1xf32>
    %79 = vector.shape_cast %78 : vector<1xf32> to vector<1x1x1xf32>
    %80 = vector.extract %79[0, 0, 0] : f32 from vector<1x1x1xf32>
    %81 = vector.broadcast %80 : f32 to vector<1x1xf32>
    %82 = vector.extract_strided_slice %45 {offsets = [1, 0], sizes = [1, 1], strides = [1, 1]} : vector<4x1xf32> to vector<1x1xf32>
    %83 = arith.mulf %81, %82 : vector<1x1xf32>
    %84 = arith.addf %66, %83 : vector<1x1xf32>
    %85 = vector.shape_cast %43 : vector<8x64xf32> to vector<1x8x64xf32>
    %cst_41 = arith.constant dense<0.000000e+00> : vector<1xf32>
    %86 = vector.multi_reduction <add>, %85, %cst_41 [1, 2] : vector<1x8x64xf32> to vector<1xf32>
    %87 = vector.shape_cast %86 : vector<1xf32> to vector<1x1x1xf32>
    %88 = vector.extract %87[0, 0, 0] : f32 from vector<1x1x1xf32>
    %89 = vector.broadcast %88 : f32 to vector<1x1xf32>
    %cst_42 = arith.constant 0.001953125 : f32
    %90 = vector.broadcast %cst_42 : f32 to vector<1x1xf32>
    %91 = arith.mulf %89, %90 : vector<1x1xf32>
    %92 = vector.extract_strided_slice %45 {offsets = [2, 0], sizes = [1, 1], strides = [1, 1]} : vector<4x1xf32> to vector<1x1xf32>
    %93 = arith.mulf %91, %92 : vector<1x1xf32>
    %94 = arith.addf %76, %93 : vector<1x1xf32>
    %95 = vector.shape_cast %43 : vector<8x64xf32> to vector<1x8x64xf32>
    %cst_43 = arith.constant dense<0xFF800000> : vector<1xf32>
    %96 = vector.multi_reduction <maximumf>, %95, %cst_43 [1, 2] : vector<1x8x64xf32> to vector<1xf32>
    %97 = vector.shape_cast %96 : vector<1xf32> to vector<1x1x1xf32>
    %98 = vector.extract %97[0, 0, 0] : f32 from vector<1x1x1xf32>
    %99 = vector.broadcast %98 : f32 to vector<1x1xf32>
    %100 = vector.extract_strided_slice %45 {offsets = [2, 0], sizes = [1, 1], strides = [1, 1]} : vector<4x1xf32> to vector<1x1xf32>
    %101 = arith.mulf %99, %100 : vector<1x1xf32>
    %102 = arith.addf %84, %101 : vector<1x1xf32>
    %103 = vector.shape_cast %44 : vector<8x64xf32> to vector<1x8x64xf32>
    %cst_44 = arith.constant dense<0.000000e+00> : vector<1xf32>
    %104 = vector.multi_reduction <add>, %103, %cst_44 [1, 2] : vector<1x8x64xf32> to vector<1xf32>
    %105 = vector.shape_cast %104 : vector<1xf32> to vector<1x1x1xf32>
    %106 = vector.extract %105[0, 0, 0] : f32 from vector<1x1x1xf32>
    %107 = vector.broadcast %106 : f32 to vector<1x1xf32>
    %cst_45 = arith.constant 0.001953125 : f32
    %108 = vector.broadcast %cst_45 : f32 to vector<1x1xf32>
    %109 = arith.mulf %107, %108 : vector<1x1xf32>
    %110 = vector.extract_strided_slice %45 {offsets = [3, 0], sizes = [1, 1], strides = [1, 1]} : vector<4x1xf32> to vector<1x1xf32>
    %111 = arith.mulf %109, %110 : vector<1x1xf32>
    %112 = arith.addf %94, %111 : vector<1x1xf32>
    %113 = vector.shape_cast %44 : vector<8x64xf32> to vector<1x8x64xf32>
    %cst_46 = arith.constant dense<0xFF800000> : vector<1xf32>
    %114 = vector.multi_reduction <maximumf>, %113, %cst_46 [1, 2] : vector<1x8x64xf32> to vector<1xf32>
    %115 = vector.shape_cast %114 : vector<1xf32> to vector<1x1x1xf32>
    %116 = vector.extract %115[0, 0, 0] : f32 from vector<1x1x1xf32>
    %117 = vector.broadcast %116 : f32 to vector<1x1xf32>
    %118 = vector.extract_strided_slice %45 {offsets = [3, 0], sizes = [1, 1], strides = [1, 1]} : vector<4x1xf32> to vector<1x1xf32>
    %119 = arith.mulf %117, %118 : vector<1x1xf32>
    %120 = arith.addf %102, %119 : vector<1x1xf32>
    %cst_47 = arith.constant 0.000000e+00 : f32
    %121 = vector.broadcast %cst_47 : f32 to vector<1x1xf32>
    %122 = arith.maximumf %112, %121 : vector<1x1xf32>
    %cst_48 = arith.constant 0.000000e+00 : f32
    %123 = vector.broadcast %cst_48 : f32 to vector<1x1xf32>
    %124 = arith.maximumf %120, %123 : vector<1x1xf32>
    %125 = arith.addf %122, %124 : vector<1x1xf32>
    %cst_49 = arith.constant 0.000000e+00 : f32
    %126 = vector.broadcast %cst_49 : f32 to vector<1x4xf32>
    %127 = vector.broadcast %125 : vector<1x1xf32> to vector<1x4xf32>
    %128 = arith.mulf %127, %46 : vector<1x4xf32>
    %129 = arith.addf %126, %128 : vector<1x4xf32>
    %130 = arith.negf %129 : vector<1x4xf32>
    %131 = math.exp %130 : vector<1x4xf32>
    %cst_50 = arith.constant 1.000000e+00 : f32
    %132 = vector.broadcast %cst_50 : f32 to vector<1x4xf32>
    %133 = arith.addf %132, %131 : vector<1x4xf32>
    %134 = arith.divf %132, %133 : vector<1x4xf32>
    %135 = vector.extract_strided_slice %134 {offsets = [0, 0], sizes = [1, 1], strides = [1, 1]} : vector<1x4xf32> to vector<1x1xf32>
    %136 = vector.broadcast %135 : vector<1x1xf32> to vector<8x64xf32>
    %137 = arith.mulf %41, %136 : vector<8x64xf32>
    %138 = vector.extract_strided_slice %134 {offsets = [0, 1], sizes = [1, 1], strides = [1, 1]} : vector<1x4xf32> to vector<1x1xf32>
    %139 = vector.broadcast %138 : vector<1x1xf32> to vector<8x64xf32>
    %140 = arith.mulf %42, %139 : vector<8x64xf32>
    %141 = vector.extract_strided_slice %134 {offsets = [0, 2], sizes = [1, 1], strides = [1, 1]} : vector<1x4xf32> to vector<1x1xf32>
    %142 = vector.broadcast %141 : vector<1x1xf32> to vector<8x64xf32>
    %143 = arith.mulf %43, %142 : vector<8x64xf32>
    %144 = vector.extract_strided_slice %134 {offsets = [0, 3], sizes = [1, 1], strides = [1, 1]} : vector<1x4xf32> to vector<1x1xf32>
    %145 = vector.broadcast %144 : vector<1x1xf32> to vector<8x64xf32>
    %146 = arith.mulf %44, %145 : vector<8x64xf32>
    %147 = arith.addf %137, %140 : vector<8x64xf32>
    %148 = arith.maximumf %137, %140 : vector<8x64xf32>
    %149 = arith.addf %147, %143 : vector<8x64xf32>
    %150 = arith.maximumf %148, %143 : vector<8x64xf32>
    %151 = arith.addf %149, %146 : vector<8x64xf32>
    %152 = arith.maximumf %150, %146 : vector<8x64xf32>
    %cst_51 = arith.constant 2.500000e-01 : f32
    %153 = vector.broadcast %cst_51 : f32 to vector<8x64xf32>
    %154 = arith.mulf %151, %153 : vector<8x64xf32>
    %155 = tpu.concatenate %154, %152 in 1 : vector<8x64xf32>, vector<8x64xf32> -> vector<8x128xf32>
    %cst_52 = arith.constant 0.000000e+00 : f32
    %156 = vector.broadcast %cst_52 : f32 to vector<3x128xf32>
    %157 = tpu.concatenate %156, %155, %156 in 0 : vector<3x128xf32>, vector<8x128xf32>, vector<3x128xf32> -> vector<14x128xf32>
    %158 = vector.extract_strided_slice %157 {offsets = [0, 0], sizes = [8, 128], strides = [1, 1]} : vector<14x128xf32> to vector<8x128xf32>
    %c0_53 = arith.constant 0 : index
    %c0_54 = arith.constant 0 : index
    %c0_55 = arith.constant 0 : index
    %159 = vector.load %arg4[%c0_53, %c0_54, %c0_55] : memref<7x128x64xf32, #tpu.memory_space<vmem>>, vector<1x128x64xf32>
    %160 = vector.shape_cast %159 : vector<1x128x64xf32> to vector<128x64xf32>
    %cst_56 = arith.constant dense<0.000000e+00> : vector<8x64xf32>
    %161 = tpu.matmul %158, %160, %cst_56 {dimension_numbers = #tpu.dot_dimension_numbers<[1], [0], [0], [1], [0, 0, 1, 1], [], []>} : vector<8x128xf32>, vector<128x64xf32>, vector<8x64xf32> -> vector<8x64xf32>
    %162 = vector.extract_strided_slice %157 {offsets = [1, 0], sizes = [8, 128], strides = [1, 1]} : vector<14x128xf32> to vector<8x128xf32>
    %c1_57 = arith.constant 1 : index
    %c0_58 = arith.constant 0 : index
    %c0_59 = arith.constant 0 : index
    %163 = vector.load %arg4[%c1_57, %c0_58, %c0_59] : memref<7x128x64xf32, #tpu.memory_space<vmem>>, vector<1x128x64xf32>
    %164 = vector.shape_cast %163 : vector<1x128x64xf32> to vector<128x64xf32>
    %cst_60 = arith.constant dense<0.000000e+00> : vector<8x64xf32>
    %165 = tpu.matmul %162, %164, %cst_60 {dimension_numbers = #tpu.dot_dimension_numbers<[1], [0], [0], [1], [0, 0, 1, 1], [], []>} : vector<8x128xf32>, vector<128x64xf32>, vector<8x64xf32> -> vector<8x64xf32>
    %166 = arith.addf %161, %165 : vector<8x64xf32>
    %167 = vector.extract_strided_slice %157 {offsets = [2, 0], sizes = [8, 128], strides = [1, 1]} : vector<14x128xf32> to vector<8x128xf32>
    %c2_61 = arith.constant 2 : index
    %c0_62 = arith.constant 0 : index
    %c0_63 = arith.constant 0 : index
    %168 = vector.load %arg4[%c2_61, %c0_62, %c0_63] : memref<7x128x64xf32, #tpu.memory_space<vmem>>, vector<1x128x64xf32>
    %169 = vector.shape_cast %168 : vector<1x128x64xf32> to vector<128x64xf32>
    %cst_64 = arith.constant dense<0.000000e+00> : vector<8x64xf32>
    %170 = tpu.matmul %167, %169, %cst_64 {dimension_numbers = #tpu.dot_dimension_numbers<[1], [0], [0], [1], [0, 0, 1, 1], [], []>} : vector<8x128xf32>, vector<128x64xf32>, vector<8x64xf32> -> vector<8x64xf32>
    %171 = arith.addf %166, %170 : vector<8x64xf32>
    %172 = vector.extract_strided_slice %157 {offsets = [3, 0], sizes = [8, 128], strides = [1, 1]} : vector<14x128xf32> to vector<8x128xf32>
    %c3 = arith.constant 3 : index
    %c0_65 = arith.constant 0 : index
    %c0_66 = arith.constant 0 : index
    %173 = vector.load %arg4[%c3, %c0_65, %c0_66] : memref<7x128x64xf32, #tpu.memory_space<vmem>>, vector<1x128x64xf32>
    %174 = vector.shape_cast %173 : vector<1x128x64xf32> to vector<128x64xf32>
    %cst_67 = arith.constant dense<0.000000e+00> : vector<8x64xf32>
    %175 = tpu.matmul %172, %174, %cst_67 {dimension_numbers = #tpu.dot_dimension_numbers<[1], [0], [0], [1], [0, 0, 1, 1], [], []>} : vector<8x128xf32>, vector<128x64xf32>, vector<8x64xf32> -> vector<8x64xf32>
    %176 = arith.addf %171, %175 : vector<8x64xf32>
    %177 = vector.extract_strided_slice %157 {offsets = [4, 0], sizes = [8, 128], strides = [1, 1]} : vector<14x128xf32> to vector<8x128xf32>
    %c4 = arith.constant 4 : index
    %c0_68 = arith.constant 0 : index
    %c0_69 = arith.constant 0 : index
    %178 = vector.load %arg4[%c4, %c0_68, %c0_69] : memref<7x128x64xf32, #tpu.memory_space<vmem>>, vector<1x128x64xf32>
    %179 = vector.shape_cast %178 : vector<1x128x64xf32> to vector<128x64xf32>
    %cst_70 = arith.constant dense<0.000000e+00> : vector<8x64xf32>
    %180 = tpu.matmul %177, %179, %cst_70 {dimension_numbers = #tpu.dot_dimension_numbers<[1], [0], [0], [1], [0, 0, 1, 1], [], []>} : vector<8x128xf32>, vector<128x64xf32>, vector<8x64xf32> -> vector<8x64xf32>
    %181 = arith.addf %176, %180 : vector<8x64xf32>
    %182 = vector.extract_strided_slice %157 {offsets = [5, 0], sizes = [8, 128], strides = [1, 1]} : vector<14x128xf32> to vector<8x128xf32>
    %c5 = arith.constant 5 : index
    %c0_71 = arith.constant 0 : index
    %c0_72 = arith.constant 0 : index
    %183 = vector.load %arg4[%c5, %c0_71, %c0_72] : memref<7x128x64xf32, #tpu.memory_space<vmem>>, vector<1x128x64xf32>
    %184 = vector.shape_cast %183 : vector<1x128x64xf32> to vector<128x64xf32>
    %cst_73 = arith.constant dense<0.000000e+00> : vector<8x64xf32>
    %185 = tpu.matmul %182, %184, %cst_73 {dimension_numbers = #tpu.dot_dimension_numbers<[1], [0], [0], [1], [0, 0, 1, 1], [], []>} : vector<8x128xf32>, vector<128x64xf32>, vector<8x64xf32> -> vector<8x64xf32>
    %186 = arith.addf %181, %185 : vector<8x64xf32>
    %187 = vector.extract_strided_slice %157 {offsets = [6, 0], sizes = [8, 128], strides = [1, 1]} : vector<14x128xf32> to vector<8x128xf32>
    %c6 = arith.constant 6 : index
    %c0_74 = arith.constant 0 : index
    %c0_75 = arith.constant 0 : index
    %188 = vector.load %arg4[%c6, %c0_74, %c0_75] : memref<7x128x64xf32, #tpu.memory_space<vmem>>, vector<1x128x64xf32>
    %189 = vector.shape_cast %188 : vector<1x128x64xf32> to vector<128x64xf32>
    %cst_76 = arith.constant dense<0.000000e+00> : vector<8x64xf32>
    %190 = tpu.matmul %187, %189, %cst_76 {dimension_numbers = #tpu.dot_dimension_numbers<[1], [0], [0], [1], [0, 0, 1, 1], [], []>} : vector<8x128xf32>, vector<128x64xf32>, vector<8x64xf32> -> vector<8x64xf32>
    %191 = arith.addf %186, %190 : vector<8x64xf32>
    %192 = arith.negf %191 : vector<8x64xf32>
    %193 = math.exp %192 : vector<8x64xf32>
    %cst_77 = arith.constant 1.000000e+00 : f32
    %194 = vector.broadcast %cst_77 : f32 to vector<8x64xf32>
    %195 = arith.addf %194, %193 : vector<8x64xf32>
    %196 = arith.divf %194, %195 : vector<8x64xf32>
    %197 = arith.mulf %137, %196 : vector<8x64xf32>
    %198 = vector.extract_strided_slice %1 {offsets = [0, 0], sizes = [8, 64], strides = [1, 1]} : vector<8x256xf32> to vector<8x64xf32>
    %199 = arith.addf %197, %198 : vector<8x64xf32>
    %cst_78 = arith.constant 0.000000e+00 : f32
    %200 = vector.broadcast %cst_78 : f32 to vector<8x64xf32>
    %201 = arith.maximumf %199, %200 : vector<8x64xf32>
    %202 = arith.mulf %140, %196 : vector<8x64xf32>
    %203 = vector.extract_strided_slice %1 {offsets = [0, 64], sizes = [8, 64], strides = [1, 1]} : vector<8x256xf32> to vector<8x64xf32>
    %204 = arith.addf %202, %203 : vector<8x64xf32>
    %cst_79 = arith.constant 0.000000e+00 : f32
    %205 = vector.broadcast %cst_79 : f32 to vector<8x64xf32>
    %206 = arith.maximumf %204, %205 : vector<8x64xf32>
    %207 = arith.mulf %143, %196 : vector<8x64xf32>
    %208 = vector.extract_strided_slice %1 {offsets = [0, 128], sizes = [8, 64], strides = [1, 1]} : vector<8x256xf32> to vector<8x64xf32>
    %209 = arith.addf %207, %208 : vector<8x64xf32>
    %cst_80 = arith.constant 0.000000e+00 : f32
    %210 = vector.broadcast %cst_80 : f32 to vector<8x64xf32>
    %211 = arith.maximumf %209, %210 : vector<8x64xf32>
    %212 = arith.mulf %146, %196 : vector<8x64xf32>
    %213 = vector.extract_strided_slice %1 {offsets = [0, 192], sizes = [8, 64], strides = [1, 1]} : vector<8x256xf32> to vector<8x64xf32>
    %214 = arith.addf %212, %213 : vector<8x64xf32>
    %cst_81 = arith.constant 0.000000e+00 : f32
    %215 = vector.broadcast %cst_81 : f32 to vector<8x64xf32>
    %216 = arith.maximumf %214, %215 : vector<8x64xf32>
    %217 = tpu.concatenate %201, %206, %211, %216 in 1 : vector<8x64xf32>, vector<8x64xf32>, vector<8x64xf32>, vector<8x64xf32> -> vector<8x256xf32>
    %c0_82 = arith.constant 0 : index
    %c0_83 = arith.constant 0 : index
    %c0_84 = arith.constant 0 : index
    %218 = vector.load %arg9[%c0_82, %c0_83, %c0_84] : memref<1x8x256xf32, #tpu.memory_space<vmem>>, vector<1x8x256xf32>
    %219 = vector.shape_cast %218 : vector<1x8x256xf32> to vector<8x256xf32>
    %220 = vector.shape_cast %217 : vector<8x256xf32> to vector<1x8x256xf32>
    tpu.vector_store %arg9[%c0_82, %c0_83, %c0_84], %220 {strides = array<i32>} : memref<1x8x256xf32, #tpu.memory_space<vmem>>, vector<1x8x256xf32>,
    return
  }
  func.func @transform_0(%arg0: i32) -> (i32, i32, i32) {
    %c0_i32 = arith.constant 0 : i32
    %c0_i32_0 = arith.constant 0 : i32
    %c0_i32_1 = arith.constant 0 : i32
    return %arg0, %c0_i32, %c0_i32_0 : i32, i32, i32
  }
  func.func @transform_1(%arg0: i32) -> (i32, i32, i32) {
    %c0_i32 = arith.constant 0 : i32
    %c0_i32_0 = arith.constant 0 : i32
    %c0_i32_1 = arith.constant 0 : i32
    %c0_i32_2 = arith.constant 0 : i32
    return %c0_i32, %c0_i32_0, %c0_i32_1 : i32, i32, i32
  }
  func.func @transform_2(%arg0: i32) -> (i32, i32, i32) {
    %c0_i32 = arith.constant 0 : i32
    %c0_i32_0 = arith.constant 0 : i32
    %c0_i32_1 = arith.constant 0 : i32
    %c0_i32_2 = arith.constant 0 : i32
    return %c0_i32, %c0_i32_0, %c0_i32_1 : i32, i32, i32
  }
  func.func @transform_3(%arg0: i32) -> (i32, i32, i32) {
    %c0_i32 = arith.constant 0 : i32
    %c0_i32_0 = arith.constant 0 : i32
    %c0_i32_1 = arith.constant 0 : i32
    %c0_i32_2 = arith.constant 0 : i32
    return %c0_i32, %c0_i32_0, %c0_i32_1 : i32, i32, i32
  }
  func.func @transform_4(%arg0: i32) -> (i32, i32) {
    %c0_i32 = arith.constant 0 : i32
    %c0_i32_0 = arith.constant 0 : i32
    %c0_i32_1 = arith.constant 0 : i32
    return %c0_i32, %c0_i32_0 : i32, i32
  }
  func.func @transform_5(%arg0: i32) -> (i32, i32) {
    %c0_i32 = arith.constant 0 : i32
    %c0_i32_0 = arith.constant 0 : i32
    %c0_i32_1 = arith.constant 0 : i32
    return %c0_i32, %c0_i32_0 : i32, i32
  }
  func.func @transform_6(%arg0: i32) -> (i32, i32) {
    %c0_i32 = arith.constant 0 : i32
    %c0_i32_0 = arith.constant 0 : i32
    %c0_i32_1 = arith.constant 0 : i32
    return %c0_i32, %c0_i32_0 : i32, i32
  }
  func.func @transform_7(%arg0: i32) -> (i32, i32) {
    %c0_i32 = arith.constant 0 : i32
    %c0_i32_0 = arith.constant 0 : i32
    %c0_i32_1 = arith.constant 0 : i32
    return %c0_i32, %c0_i32_0 : i32, i32
  }
  func.func @transform_8(%arg0: i32) -> (i32, i32, i32) {
    %c0_i32 = arith.constant 0 : i32
    %c0_i32_0 = arith.constant 0 : i32
    %c0_i32_1 = arith.constant 0 : i32
    return %arg0, %c0_i32, %c0_i32_0 : i32, i32, i32
  }
}

</mosaic_0001>

<llo_original>
// kernel: mul.13
$region0: #{mul.13}
  %s0 = inlined_call_operand.vmem [shape: f32[4,64], index: 0, kind: input, shape index: {}]
  %s1 = inlined_call_operand.vmem [shape: f32[256], index: 1, kind: output, shape index: {}]
  $region1: #{mul.13} parent=0
    #allocation0 [shape = 'u8[4096]{0}', space=vmem, size = 0x1000, scoped, tag = 'scoped mem for output reshape']
    #allocation1 [shape = 'u8[4096]{0}', space=vmem, size = 0x1000, scoped, tag = 'scoped mem for input reshape']
    %s3 = sshll.u32 1, 4
    %s4 = ssub.s32 %s3, 1
    %v5 = vld [vmem:[%s0] sm:%s4]
    %6 = vst [vmem:[#allocation1] sm:%s4] %v5
    %s7 = smov 3
    %v8 = vld [vmem:[#allocation1] ss:$2 sm:%s7]
    %vm9 = vcmask 523264
    %10 = vst.msk [vmem:[#allocation0] sm:$0x3] %vm9, %v8
    %s11 = scalar_lea.vmem [#allocation1], 1
    %s12 = smov 3
    %v13 = vld [vmem:[%s11] ss:$2 sm:%s12]
    %14 = vrot.lane.b32.xlu0 %v13, 64
    %v15 = vpop.permute.xlu0 %14
    %vm16 = vcmask 1048064
    %17 = vst.msk [vmem:[#allocation0] sm:$0x3] %vm16, %v15
    %s19 = sshll.u32 1, 2
    %s20 = ssub.s32 %s19, 1
    %v22 = vld [vmem:[#allocation0] sm:%s20]
    %s23 = sshll.u32 1, 2
    %s24 = ssub.s32 %s23, 1
    %25 = vst [vmem:[%s1] sm:%s24] %v22

// kernel: basic_block_forward.1
$region0: #{basic_block_forward.1}
  #allocation0 [shape = 'u32[]', space=smem, size = 0x4, offset = 0x4, fixed_abs, tag = 'smem constant byte address 0x4 - core index']
  #allocation1 [shape = 'u32[144,128]{1,0:T(1,128)}', space=vmem, size = 0x12000, scoped, tag = 'internal scratch']
  %s0 = inlined_call_operand.vmem [shape: f32[2,8,256], index: 0, kind: input, shape index: {}]
  %s1 = inlined_call_operand.vmem [shape: f32[3,256,256], index: 1, kind: input, shape index: {}]
  %s2 = inlined_call_operand.vmem [shape: f32[3,256,256], index: 2, kind: input, shape index: {}]
  %s3 = inlined_call_operand.vmem [shape: f32[7,128,64], index: 3, kind: input, shape index: {}]
  %s4 = inlined_call_operand.vmem [shape: f32[1,256], index: 4, kind: input, shape index: {}]
  %s5 = inlined_call_operand.vmem [shape: f32[1,256], index: 5, kind: input, shape index: {}]
  %s6 = inlined_call_operand.vmem [shape: f32[4,1], index: 6, kind: input, shape index: {}]
  %s7 = inlined_call_operand.vmem [shape: f32[1,4], index: 7, kind: input, shape index: {}]
  %s8 = inlined_call_operand.vmem [shape: f32[2,8,256], index: 8, kind: output, shape index: {}]
  %s9 = sld [smem:[#allocation0]]
  $region65: #{basic_block_forward.1} parent=0
    _
  %s11 = ssub.s32 1, %s9
  %s12 = scalar_select 0, %s11, %s9
  loop: start=0, step=1, limit=4
  $region2: #{basic_block_forward.1} parent=0 // loop_pre_header
    _
  $region3: #{basic_block_forward.1} parent=0 // loop_header
    %s14 = sphi 0, %s18
    %p15 = scmp.ge.s32.totalorder %s14, 4
    %s24 = sphi 0, %s26
    %s27 = sphi 0, %s24
    %s28 = sphi 0, %s27
    %s44 = sphi 0, %s28
    %s48 = sphi 0, %s48
    %s50 = sphi 0, %s48
    %s51 = sphi 0, %s50
    %s65 = sphi 0, %s51
    %s69 = sphi 0, %s69
    %s71 = sphi 0, %s69
    %s72 = sphi 0, %s71
    %s86 = sphi 0, %s72
    %s90 = sphi 0, %s90
    %s92 = sphi 0, %s90
    %s93 = sphi 0, %s92
    %s107 = sphi 0, %s93
    %s111 = sphi 0, %s111
    %s113 = sphi 0, %s111
    %s114 = sphi 0, %s113
    %s128 = sphi 0, %s114
    %s132 = sphi 0, %s132
    %s134 = sphi 0, %s132
    %s135 = sphi 0, %s134
    %s149 = sphi 0, %s135
    %s153 = sphi 0, %s153
    %s155 = sphi 0, %s153
    %s156 = sphi 0, %s155
    %s170 = sphi 0, %s156
    %s174 = sphi 0, %s174
    %s176 = sphi 0, %s174
    %s177 = sphi 0, %s176
    %s191 = sphi 0, %s177
    %s197 = sphi 0, %s199
    %s200 = sphi 0, %s197
    %s201 = sphi 0, %s200
    %s217 = sphi 0, %s201
  $region4: #{basic_block_forward.1} parent=0 // loop_header_branch
    %17 = sbr.rel (%p15) target = $region8
  $region5: #{basic_block_forward.1} parent=0 // loop_body
    %s19 = ssub.s32 %s14, 1
    %s20 = ssub.s32 %s14, 2
    %s21 = sadd.s32 %s14, 1
    %s22 = ssub.s32 %s14, %s21
    %p23 = scmp.eq.s32.totalorder %s22, 0
    %s25 = sadd.s32 %s24, 1
    %s26 = scalar_select %p23, %s24, %s25
    %p29 = pneg %p23
    %p30 = scmp.eq.s32.totalorder %s14, 1
    %p31 = por %p29, %p30
    %p32 = scmp.ne.s32.totalorder %s24, %s27
    %p33 = scmp.eq.s32.totalorder %s14, 0
    %p34 = por %p32, %p33
    %p35 = scmp.ne.s32.totalorder %s24, %s27
    %p36 = scmp.eq.s32.totalorder %s19, 1
    %p37 = por %p35, %p36
    %p38 = scmp.ne.s32.totalorder %s27, %s28
    %p39 = scmp.eq.s32.totalorder %s19, 0
    %p40 = por %p38, %p39
    %p41 = scmp.ne.s32.totalorder %s27, %s28
    %p42 = scmp.eq.s32.totalorder %s20, 1
    %p43 = por %p41, %p42
    %p45 = scmp.ne.s32.totalorder %s28, %s44
    %p46 = scmp.eq.s32.totalorder %s20, 0
    %p47 = por %p45, %p46
    %s49 = sadd.s32 %s48, 1
    %p52 = scmp.eq.s32.totalorder %s14, 1
    %p53 = scmp.ne.s32.totalorder %s48, %s50
    %p54 = scmp.eq.s32.totalorder %s14, 0
    %p55 = por %p53, %p54
    %p56 = scmp.ne.s32.totalorder %s48, %s50
    %p57 = scmp.eq.s32.totalorder %s19, 1
    %p58 = por %p56, %p57
    %p59 = scmp.ne.s32.totalorder %s50, %s51
    %p60 = scmp.eq.s32.totalorder %s19, 0
    %p61 = por %p59, %p60
    %p62 = scmp.ne.s32.totalorder %s50, %s51
    %p63 = scmp.eq.s32.totalorder %s20, 1
    %p64 = por %p62, %p63
    %p66 = scmp.ne.s32.totalorder %s51, %s65
    %p67 = scmp.eq.s32.totalorder %s20, 0
    %p68 = por %p66, %p67
    %s70 = sadd.s32 %s69, 1
    %p73 = scmp.eq.s32.totalorder %s14, 1
    %p74 = scmp.ne.s32.totalorder %s69, %s71
    %p75 = scmp.eq.s32.totalorder %s14, 0
    %p76 = por %p74, %p75
    %p77 = scmp.ne.s32.totalorder %s69, %s71
    %p78 = scmp.eq.s32.totalorder %s19, 1
    %p79 = por %p77, %p78
    %p80 = scmp.ne.s32.totalorder %s71, %s72
    %p81 = scmp.eq.s32.totalorder %s19, 0
    %p82 = por %p80, %p81
    %p83 = scmp.ne.s32.totalorder %s71, %s72
    %p84 = scmp.eq.s32.totalorder %s20, 1
    %p85 = por %p83, %p84
    %p87 = scmp.ne.s32.totalorder %s72, %s86
    %p88 = scmp.eq.s32.totalorder %s20, 0
    %p89 = por %p87, %p88
    %s91 = sadd.s32 %s90, 1
    %p94 = scmp.eq.s32.totalorder %s14, 1
    %p95 = scmp.ne.s32.totalorder %s90, %s92
    %p96 = scmp.eq.s32.totalorder %s14, 0
    %p97 = por %p95, %p96
    %p98 = scmp.ne.s32.totalorder %s90, %s92
    %p99 = scmp.eq.s32.totalorder %s19, 1
    %p100 = por %p98, %p99
    %p101 = scmp.ne.s32.totalorder %s92, %s93
    %p102 = scmp.eq.s32.totalorder %s19, 0
    %p103 = por %p101, %p102
    %p104 = scmp.ne.s32.totalorder %s92, %s93
    %p105 = scmp.eq.s32.totalorder %s20, 1
    %p106 = por %p104, %p105
    %p108 = scmp.ne.s32.totalorder %s93, %s107
    %p109 = scmp.eq.s32.totalorder %s20, 0
    %p110 = por %p108, %p109
    %s112 = sadd.s32 %s111, 1
    %p115 = scmp.eq.s32.totalorder %s14, 1
    %p116 = scmp.ne.s32.totalorder %s111, %s113
    %p117 = scmp.eq.s32.totalorder %s14, 0
    %p118 = por %p116, %p117
    %p119 = scmp.ne.s32.totalorder %s111, %s113
    %p120 = scmp.eq.s32.totalorder %s19, 1
    %p121 = por %p119, %p120
    %p122 = scmp.ne.s32.totalorder %s113, %s114
    %p123 = scmp.eq.s32.totalorder %s19, 0
    %p124 = por %p122, %p123
    %p125 = scmp.ne.s32.totalorder %s113, %s114
    %p126 = scmp.eq.s32.totalorder %s20, 1
    %p127 = por %p125, %p126
    %p129 = scmp.ne.s32.totalorder %s114, %s128
    %p130 = scmp.eq.s32.totalorder %s20, 0
    %p131 = por %p129, %p130
    %s133 = sadd.s32 %s132, 1
    %p136 = scmp.eq.s32.totalorder %s14, 1
    %p137 = scmp.ne.s32.totalorder %s132, %s134
    %p138 = scmp.eq.s32.totalorder %s14, 0
    %p139 = por %p137, %p138
    %p140 = scmp.ne.s32.totalorder %s132, %s134
    %p141 = scmp.eq.s32.totalorder %s19, 1
    %p142 = por %p140, %p141
    %p143 = scmp.ne.s32.totalorder %s134, %s135
    %p144 = scmp.eq.s32.totalorder %s19, 0
    %p145 = por %p143, %p144
    %p146 = scmp.ne.s32.totalorder %s134, %s135
    %p147 = scmp.eq.s32.totalorder %s20, 1
    %p148 = por %p146, %p147
    %p150 = scmp.ne.s32.totalorder %s135, %s149
    %p151 = scmp.eq.s32.totalorder %s20, 0
    %p152 = por %p150, %p151
    %s154 = sadd.s32 %s153, 1
    %p157 = scmp.eq.s32.totalorder %s14, 1
    %p158 = scmp.ne.s32.totalorder %s153, %s155
    %p159 = scmp.eq.s32.totalorder %s14, 0
    %p160 = por %p158, %p159
    %p161 = scmp.ne.s32.totalorder %s153, %s155
    %p162 = scmp.eq.s32.totalorder %s19, 1
    %p163 = por %p161, %p162
    %p164 = scmp.ne.s32.totalorder %s155, %s156
    %p165 = scmp.eq.s32.totalorder %s19, 0
    %p166 = por %p164, %p165
    %p167 = scmp.ne.s32.totalorder %s155, %s156
    %p168 = scmp.eq.s32.totalorder %s20, 1
    %p169 = por %p167, %p168
    %p171 = scmp.ne.s32.totalorder %s156, %s170
    %p172 = scmp.eq.s32.totalorder %s20, 0
    %p173 = por %p171, %p172
    %s175 = sadd.s32 %s174, 1
    %p178 = scmp.eq.s32.totalorder %s14, 1
    %p179 = scmp.ne.s32.totalorder %s174, %s176
    %p180 = scmp.eq.s32.totalorder %s14, 0
    %p181 = por %p179, %p180
    %p182 = scmp.ne.s32.totalorder %s174, %s176
    %p183 = scmp.eq.s32.totalorder %s19, 1
    %p184 = por %p182, %p183
    %p185 = scmp.ne.s32.totalorder %s176, %s177
    %p186 = scmp.eq.s32.totalorder %s19, 0
    %p187 = por %p185, %p186
    %p188 = scmp.ne.s32.totalorder %s176, %s177
    %p189 = scmp.eq.s32.totalorder %s20, 1
    %p190 = por %p188, %p189
    %p192 = scmp.ne.s32.totalorder %s177, %s191
    %p193 = scmp.eq.s32.totalorder %s20, 0
    %p194 = por %p192, %p193
    %s195 = ssub.s32 %s14, %s21
    %p196 = scmp.eq.s32.totalorder %s195, 0
    %s198 = sadd.s32 %s197, 1
    %s199 = scalar_select %p196, %s197, %s198
    %p202 = pneg %p196
    %p203 = scmp.eq.s32.totalorder %s14, 1
    %p204 = por %p202, %p203
    %p205 = scmp.ne.s32.totalorder %s197, %s200
    %p206 = scmp.eq.s32.totalorder %s14, 0
    %p207 = por %p205, %p206
    %p208 = scmp.ne.s32.totalorder %s197, %s200
    %p209 = scmp.eq.s32.totalorder %s19, 1
    %p210 = por %p208, %p209
    %p211 = scmp.ne.s32.totalorder %s200, %s201
    %p212 = scmp.eq.s32.totalorder %s19, 0
    %p213 = por %p211, %p212
    %p214 = scmp.ne.s32.totalorder %s200, %s201
    %p215 = scmp.eq.s32.totalorder %s20, 1
    %p216 = por %p214, %p215
    %p218 = scmp.ne.s32.totalorder %s201, %s217
    %p219 = scmp.eq.s32.totalorder %s20, 0
    %p220 = por %p218, %p219
    %p221 = scmp.le.s32.totalorder 1, %s14
    %p222 = scmp.lt.s32.totalorder %s14, 3
    %p223 = pnand %p221, %p222
    %p224 = pneg %p223
    // Predicated region
    $region9: #{basic_block_forward.1} parent=5 // pred_check
      _
    $region10: #{basic_block_forward.1} parent=5 // pred_check_branch
      %226 = sbr.rel (%p223) target = $region12
    $region11: #{basic_block_forward.1} parent=5 // pred_region
      %s227 = ssub.s32 %s14, 1
      // Predicated region
      $region13: #{basic_block_forward.1} parent=11 // pred_check
        %p228 = pneg %p61
      $region14: #{basic_block_forward.1} parent=11 // pred_check_branch
        %230 = sbr.rel (%p228) target = $region16
      $region15: #{basic_block_forward.1} parent=11 // pred_region
        _
      $region16: #{basic_block_forward.1} parent=11 // pred_fallthru
        _
      // Predicated region
      $region17: #{basic_block_forward.1} parent=11 // pred_check
        %p231 = pneg %p82
      $region18: #{basic_block_forward.1} parent=11 // pred_check_branch
        %233 = sbr.rel (%p231) target = $region20
      $region19: #{basic_block_forward.1} parent=11 // pred_region
        _
      $region20: #{basic_block_forward.1} parent=11 // pred_fallthru
        _
      // Predicated region
      $region21: #{basic_block_forward.1} parent=11 // pred_check
        %p234 = pneg %p103
      $region22: #{basic_block_forward.1} parent=11 // pred_check_branch
        %236 = sbr.rel (%p234) target = $region24
      $region23: #{basic_block_forward.1} parent=11 // pred_region
        _
      $region24: #{basic_block_forward.1} parent=11 // pred_fallthru
        _
      // Predicated region
      $region25: #{basic_block_forward.1} parent=11 // pred_check
        %p237 = pneg %p124
      $region26: #{basic_block_forward.1} parent=11 // pred_check_branch
        %239 = sbr.rel (%p237) target = $region28
      $region27: #{basic_block_forward.1} parent=11 // pred_region
        _
      $region28: #{basic_block_forward.1} parent=11 // pred_fallthru
        _
      // Predicated region
      $region29: #{basic_block_forward.1} parent=11 // pred_check
        %p240 = pneg %p145
      $region30: #{basic_block_forward.1} parent=11 // pred_check_branch
        %242 = sbr.rel (%p240) target = $region32
      $region31: #{basic_block_forward.1} parent=11 // pred_region
        _
      $region32: #{basic_block_forward.1} parent=11 // pred_fallthru
        _
      // Predicated region
      $region33: #{basic_block_forward.1} parent=11 // pred_check
        %p243 = pneg %p166
      $region34: #{basic_block_forward.1} parent=11 // pred_check_branch
        %245 = sbr.rel (%p243) target = $region36
      $region35: #{basic_block_forward.1} parent=11 // pred_region
        _
      $region36: #{basic_block_forward.1} parent=11 // pred_fallthru
        _
      // Predicated region
      $region37: #{basic_block_forward.1} parent=11 // pred_check
        %p246 = pneg %p187
      $region38: #{basic_block_forward.1} parent=11 // pred_check_branch
        %248 = sbr.rel (%p246) target = $region40
      $region39: #{basic_block_forward.1} parent=11 // pred_region
        _
      $region40: #{basic_block_forward.1} parent=11 // pred_fallthru
        _
    $region12: #{basic_block_forward.1} parent=5 // pred_fallthru
      _
    %p249 = scmp.lt.s32.totalorder %s14, 2
    // Predicated region
    $region41: #{basic_block_forward.1} parent=5 // pred_check
      %p250 = pneg %p249
    $region42: #{basic_block_forward.1} parent=5 // pred_check_branch
      %252 = sbr.rel (%p250) target = $region44
    $region43: #{basic_block_forward.1} parent=5 // pred_region
      // Predicated region
      $region45: #{basic_block_forward.1} parent=43 // pred_check
        %p253 = pneg %p34
      $region46: #{basic_block_forward.1} parent=43 // pred_check_branch
        %255 = sbr.rel (%p253) target = $region48
      $region47: #{basic_block_forward.1} parent=43 // pred_region
        %p256 = scmp.lt.s32.totalorder %s14, 1
        %s257 = scalar_select %p256, %s14, 1
        %s258 = smul.addr %s257, 2
        %s259 = smul.addr %s258, 8
        %s260 = scalar_lea.vmem %s0, %s259
      $region48: #{basic_block_forward.1} parent=43 // pred_fallthru
        _
    $region44: #{basic_block_forward.1} parent=5 // pred_fallthru
      _
    %p261 = scmp.le.s32.totalorder 1, %s14
    %p262 = scmp.lt.s32.totalorder %s14, 3
    %p263 = pnand %p261, %p262
    %p264 = pneg %p263
    // Predicated region
    $region49: #{basic_block_forward.1} parent=5 // pred_check
      _
    $region50: #{basic_block_forward.1} parent=5 // pred_check_branch
      %266 = sbr.rel (%p263) target = $region52
    $region51: #{basic_block_forward.1} parent=5 // pred_region
      %s267 = ssub.s32 %s14, 1
      %p268 = scmp.lt.s32.totalorder %s19, 1
      %s269 = scalar_select %p268, %s19, 1
      %s270 = smul.addr %s269, 2
      %s271 = smul.addr %s270, 8
      %s272 = scalar_lea.vmem %s0, %s271
      %p273 = pneg %p40
      %p274 = pneg %p37
      %p275 = pneg %p61
      %p276 = pneg %p58
      %p277 = pneg %p82
      %p278 = pneg %p79
      %p279 = pneg %p103
      %p280 = pneg %p100
      %p281 = pneg %p124
      %p282 = pneg %p121
      %p283 = pneg %p145
      %p284 = pneg %p142
      %p285 = pneg %p166
      %p286 = pneg %p163
      %p287 = pneg %p187
      %p288 = pneg %p184
      %p289 = pneg %p213
      %p290 = pneg %p210
      %p291 = scmp.lt.s32.totalorder %s19, 1
      %s292 = scalar_select %p291, %s19, 1
      %s293 = smul.addr %s292, 2
      %s294 = smul.addr %s293, 8
      %s295 = scalar_lea.vmem %s8, %s294
      %p296 = scmp.lt.s32.totalorder %s19, 1
      %s297 = scalar_select %p296, %s19, 1
      %s298 = smul.addr %s297, 2
      %s299 = smul.addr %s298, 8
      %s300 = scalar_lea.vmem %s0, %s299
      %p301 = scmp.lt.s32.totalorder %s19, 1
      %s302 = scalar_select %p301, %s19, 1
      %s303 = smul.addr %s302, 2
      %s304 = smul.addr %s303, 8
      %s305 = scalar_lea.vmem %s8, %s304
      %v306 = vld [vmem:[%s300] sm:$0xff]
      %v307 = vld [vmem:[%s300 + $0x8] sm:$0xff]
      %v310 = vrot.slane %v306, 7
      %v311 = vrot.slane %v307, 7
      %vm314 = vcmask 1040384
      %v315 = vsel %vm314, 0.0, %v310
      %v316 = vsel %vm314, 0.0, %v311
      %v317 = vsel %vm314, %v310, 0.0
      %v318 = vsel %vm314, %v311, 0.0
      %v319 = vld [vmem:[%s1] sm:$0xff]
      %v320 = vld [vmem:[%s1 + $0x8] sm:$0xff]
      %v321 = vld [vmem:[%s1 + $0x10] sm:$0xff]
      %v322 = vld [vmem:[%s1 + $0x18] sm:$0xff]
      %v323 = vld [vmem:[%s1 + $0x20] sm:$0xff]
      %v324 = vld [vmem:[%s1 + $0x28] sm:$0xff]
      %v325 = vld [vmem:[%s1 + $0x30] sm:$0xff]
      %v326 = vld [vmem:[%s1 + $0x38] sm:$0xff]
      %v327 = vld [vmem:[%s1 + $0x40] sm:$0xff]
      %v328 = vld [vmem:[%s1 + $0x48] sm:$0xff]
      %v329 = vld [vmem:[%s1 + $0x50] sm:$0xff]
      %v330 = vld [vmem:[%s1 + $0x58] sm:$0xff]
      %v331 = vld [vmem:[%s1 + $0x60] sm:$0xff]
      %v332 = vld [vmem:[%s1 + $0x68] sm:$0xff]
      %v333 = vld [vmem:[%s1 + $0x70] sm:$0xff]
      %v334 = vld [vmem:[%s1 + $0x78] sm:$0xff]
      %v335 = vld [vmem:[%s1 + $0x80] sm:$0xff]
      %v336 = vld [vmem:[%s1 + $0x88] sm:$0xff]
      %v337 = vld [vmem:[%s1 + $0x90] sm:$0xff]
      %v338 = vld [vmem:[%s1 + $0x98] sm:$0xff]
      %v339 = vld [vmem:[%s1 + $0xa0] sm:$0xff]
      %v340 = vld [vmem:[%s1 + $0xa8] sm:$0xff]
      %v341 = vld [vmem:[%s1 + $0xb0] sm:$0xff]
      %v342 = vld [vmem:[%s1 + $0xb8] sm:$0xff]
      %v343 = vld [vmem:[%s1 + $0xc0] sm:$0xff]
      %v344 = vld [vmem:[%s1 + $0xc8] sm:$0xff]
      %v345 = vld [vmem:[%s1 + $0xd0] sm:$0xff]
      %v346 = vld [vmem:[%s1 + $0xd8] sm:$0xff]
      %v347 = vld [vmem:[%s1 + $0xe0] sm:$0xff]
      %v348 = vld [vmem:[%s1 + $0xe8] sm:$0xff]
      %v349 = vld [vmem:[%s1 + $0xf0] sm:$0xff]
      %v350 = vld [vmem:[%s1 + $0xf8] sm:$0xff]
      %v351 = vld [vmem:[%s1 + $0x100] sm:$0xff]
      %v352 = vld [vmem:[%s1 + $0x108] sm:$0xff]
      %v353 = vld [vmem:[%s1 + $0x110] sm:$0xff]
      %v354 = vld [vmem:[%s1 + $0x118] sm:$0xff]
      %v355 = vld [vmem:[%s1 + $0x120] sm:$0xff]
      %v356 = vld [vmem:[%s1 + $0x128] sm:$0xff]
      %v357 = vld [vmem:[%s1 + $0x130] sm:$0xff]
      %v358 = vld [vmem:[%s1 + $0x138] sm:$0xff]
      %v359 = vld [vmem:[%s1 + $0x140] sm:$0xff]
      %v360 = vld [vmem:[%s1 + $0x148] sm:$0xff]
      %v361 = vld [vmem:[%s1 + $0x150] sm:$0xff]
      %v362 = vld [vmem:[%s1 + $0x158] sm:$0xff]
      %v363 = vld [vmem:[%s1 + $0x160] sm:$0xff]
      %v364 = vld [vmem:[%s1 + $0x168] sm:$0xff]
      %v365 = vld [vmem:[%s1 + $0x170] sm:$0xff]
      %v366 = vld [vmem:[%s1 + $0x178] sm:$0xff]
      %v367 = vld [vmem:[%s1 + $0x180] sm:$0xff]
      %v368 = vld [vmem:[%s1 + $0x188] sm:$0xff]
      %v369 = vld [vmem:[%s1 + $0x190] sm:$0xff]
      %v370 = vld [vmem:[%s1 + $0x198] sm:$0xff]
      %v371 = vld [vmem:[%s1 + $0x1a0] sm:$0xff]
      %v372 = vld [vmem:[%s1 + $0x1a8] sm:$0xff]
      %v373 = vld [vmem:[%s1 + $0x1b0] sm:$0xff]
      %v374 = vld [vmem:[%s1 + $0x1b8] sm:$0xff]
      %v375 = vld [vmem:[%s1 + $0x1c0] sm:$0xff]
      %v376 = vld [vmem:[%s1 + $0x1c8] sm:$0xff]
      %v377 = vld [vmem:[%s1 + $0x1d0] sm:$0xff]
      %v378 = vld [vmem:[%s1 + $0x1d8] sm:$0xff]
      %v379 = vld [vmem:[%s1 + $0x1e0] sm:$0xff]
      %v380 = vld [vmem:[%s1 + $0x1e8] sm:$0xff]
      %v381 = vld [vmem:[%s1 + $0x1f0] sm:$0xff]
      %v382 = vld [vmem:[%s1 + $0x1f8] sm:$0xff]
      %s383 = scalar_lea.vmem %s1, 512
      %v384 = vld [vmem:[%s383] sm:$0xff]
      %v385 = vld [vmem:[%s383 + $0x8] sm:$0xff]
      %v386 = vld [vmem:[%s383 + $0x10] sm:$0xff]
      %v387 = vld [vmem:[%s383 + $0x18] sm:$0xff]
      %v388 = vld [vmem:[%s383 + $0x20] sm:$0xff]
      %v389 = vld [vmem:[%s383 + $0x28] sm:$0xff]
      %v390 = vld [vmem:[%s383 + $0x30] sm:$0xff]
      %v391 = vld [vmem:[%s383 + $0x38] sm:$0xff]
      %v392 = vld [vmem:[%s383 + $0x40] sm:$0xff]
      %v393 = vld [vmem:[%s383 + $0x48] sm:$0xff]
      %v394 = vld [vmem:[%s383 + $0x50] sm:$0xff]
      %v395 = vld [vmem:[%s383 + $0x58] sm:$0xff]
      %v396 = vld [vmem:[%s383 + $0x60] sm:$0xff]
      %v397 = vld [vmem:[%s383 + $0x68] sm:$0xff]
      %v398 = vld [vmem:[%s383 + $0x70] sm:$0xff]
      %v399 = vld [vmem:[%s383 + $0x78] sm:$0xff]
      %v400 = vld [vmem:[%s383 + $0x80] sm:$0xff]
      %v401 = vld [vmem:[%s383 + $0x88] sm:$0xff]
      %v402 = vld [vmem:[%s383 + $0x90] sm:$0xff]
      %v403 = vld [vmem:[%s383 + $0x98] sm:$0xff]
      %v404 = vld [vmem:[%s383 + $0xa0] sm:$0xff]
      %v405 = vld [vmem:[%s383 + $0xa8] sm:$0xff]
      %v406 = vld [vmem:[%s383 + $0xb0] sm:$0xff]
      %v407 = vld [vmem:[%s383 + $0xb8] sm:$0xff]
      %v408 = vld [vmem:[%s383 + $0xc0] sm:$0xff]
      %v409 = vld [vmem:[%s383 + $0xc8] sm:$0xff]
      %v410 = vld [vmem:[%s383 + $0xd0] sm:$0xff]
      %v411 = vld [vmem:[%s383 + $0xd8] sm:$0xff]
      %v412 = vld [vmem:[%s383 + $0xe0] sm:$0xff]
      %v413 = vld [vmem:[%s383 + $0xe8] sm:$0xff]
      %v414 = vld [vmem:[%s383 + $0xf0] sm:$0xff]
      %v415 = vld [vmem:[%s383 + $0xf8] sm:$0xff]
      %v416 = vld [vmem:[%s383 + $0x100] sm:$0xff]
      %v417 = vld [vmem:[%s383 + $0x108] sm:$0xff]
      %v418 = vld [vmem:[%s383 + $0x110] sm:$0xff]
      %v419 = vld [vmem:[%s383 + $0x118] sm:$0xff]
      %v420 = vld [vmem:[%s383 + $0x120] sm:$0xff]
      %v421 = vld [vmem:[%s383 + $0x128] sm:$0xff]
      %v422 = vld [vmem:[%s383 + $0x130] sm:$0xff]
      %v423 = vld [vmem:[%s383 + $0x138] sm:$0xff]
      %v424 = vld [vmem:[%s383 + $0x140] sm:$0xff]
      %v425 = vld [vmem:[%s383 + $0x148] sm:$0xff]
      %v426 = vld [vmem:[%s383 + $0x150] sm:$0xff]
      %v427 = vld [vmem:[%s383 + $0x158] sm:$0xff]
      %v428 = vld [vmem:[%s383 + $0x160] sm:$0xff]
      %v429 = vld [vmem:[%s383 + $0x168] sm:$0xff]
      %v430 = vld [vmem:[%s383 + $0x170] sm:$0xff]
      %v431 = vld [vmem:[%s383 + $0x178] sm:$0xff]
      %v432 = vld [vmem:[%s383 + $0x180] sm:$0xff]
      %v433 = vld [vmem:[%s383 + $0x188] sm:$0xff]
      %v434 = vld [vmem:[%s383 + $0x190] sm:$0xff]
      %v435 = vld [vmem:[%s383 + $0x198] sm:$0xff]
      %v436 = vld [vmem:[%s383 + $0x1a0] sm:$0xff]
      %v437 = vld [vmem:[%s383 + $0x1a8] sm:$0xff]
      %v438 = vld [vmem:[%s383 + $0x1b0] sm:$0xff]
      %v439 = vld [vmem:[%s383 + $0x1b8] sm:$0xff]
      %v440 = vld [vmem:[%s383 + $0x1c0] sm:$0xff]
      %v441 = vld [vmem:[%s383 + $0x1c8] sm:$0xff]
      %v442 = vld [vmem:[%s383 + $0x1d0] sm:$0xff]
      %v443 = vld [vmem:[%s383 + $0x1d8] sm:$0xff]
      %v444 = vld [vmem:[%s383 + $0x1e0] sm:$0xff]
      %v445 = vld [vmem:[%s383 + $0x1e8] sm:$0xff]
      %v446 = vld [vmem:[%s383 + $0x1f0] sm:$0xff]
      %v447 = vld [vmem:[%s383 + $0x1f8] sm:$0xff]
      %vm452 = vcmask 1046528
      %v453 = vrot.slane %v315, 1
      %v454 = vrot.slane %v317, 1
      %v455 = vsel %vm452, %v453, %v454
      %v456 = vrot.slane %v316, 1
      %v457 = vrot.slane %v318, 1
      %v458 = vsel %vm452, %v456, %v457
      %461 = vmatprep.subr.mxu0 %v415
      %462 = vmatpush1.msra.mxu0 %v414
      %463 = vmatprep.subr.mxu0 %v413
      %464 = vmatpush1.msra.mxu0 %v412
      %465 = vmatprep.subr.mxu0 %v411
      %466 = vmatpush1.msra.mxu0 %v410
      %467 = vmatprep.subr.mxu0 %v409
      %468 = vmatpush1.msra.mxu0 %v408
      %469 = vmatprep.subr.mxu0 %v407
      %470 = vmatpush1.msra.mxu0 %v406
      %471 = vmatprep.subr.mxu0 %v405
      %472 = vmatpush1.msra.mxu0 %v404
      %473 = vmatprep.subr.mxu0 %v403
      %474 = vmatpush1.msra.mxu0 %v402
      %475 = vmatprep.subr.mxu0 %v401
      %476 = vmatpush1.msra.mxu0 %v400
      %477 = vmatprep.subr.mxu0 %v399
      %478 = vmatpush1.msra.mxu0 %v398
      %479 = vmatprep.subr.mxu0 %v397
      %480 = vmatpush1.msra.mxu0 %v396
      %481 = vmatprep.subr.mxu0 %v395
      %482 = vmatpush1.msra.mxu0 %v394
      %483 = vmatprep.subr.mxu0 %v393
      %484 = vmatpush1.msra.mxu0 %v392
      %485 = vmatprep.subr.mxu0 %v391
      %486 = vmatpush1.msra.mxu0 %v390
      %487 = vmatprep.subr.mxu0 %v389
      %488 = vmatpush1.msra.mxu0 %v388
      %489 = vmatprep.subr.mxu0 %v387
      %490 = vmatpush1.msra.mxu0 %v386
      %491 = vmatprep.subr.mxu0 %v385
      %492 = vmatpush1.msra.mxu0 %v384
      %493 = vmatprep.subr.mxu0 %v447
      %494 = vmatpush2.msra.mxu0 %v446
      %495 = vmatprep.subr.mxu0 %v445
      %496 = vmatpush2.msra.mxu0 %v444
      %497 = vmatprep.subr.mxu0 %v443
      %498 = vmatpush2.msra.mxu0 %v442
      %499 = vmatprep.subr.mxu0 %v441
      %500 = vmatpush2.msra.mxu0 %v440
      %501 = vmatprep.subr.mxu0 %v439
      %502 = vmatpush2.msra.mxu0 %v438
      %503 = vmatprep.subr.mxu0 %v437
      %504 = vmatpush2.msra.mxu0 %v436
      %505 = vmatprep.subr.mxu0 %v435
      %506 = vmatpush2.msra.mxu0 %v434
      %507 = vmatprep.subr.mxu0 %v433
      %508 = vmatpush2.msra.mxu0 %v432
      %509 = vmatprep.subr.mxu0 %v431
      %510 = vmatpush2.msra.mxu0 %v430
      %511 = vmatprep.subr.mxu0 %v429
      %512 = vmatpush2.msra.mxu0 %v428
      %513 = vmatprep.subr.mxu0 %v427
      %514 = vmatpush2.msra.mxu0 %v426
      %515 = vmatprep.subr.mxu0 %v425
      %516 = vmatpush2.msra.mxu0 %v424
      %517 = vmatprep.subr.mxu0 %v423
      %518 = vmatpush2.msra.mxu0 %v422
      %519 = vmatprep.subr.mxu0 %v421
      %520 = vmatpush2.msra.mxu0 %v420
      %521 = vmatprep.subr.mxu0 %v419
      %522 = vmatpush2.msra.mxu0 %v418
      %523 = vmatprep.subr.mxu0 %v417
      %524 = vmatpush2.msra.mxu0 %v416
      %525 = vmatprep.mubr.f32.mxu0 %v458
      %526 = vmatmul.mubr.f32.gmra.mxu0 %v455
      %v527 = vpop.f32.mrf.mxu0
      %v528 = vadd.f32 0.0, %v527
      %v529 = vpop.f32.mrf.mxu0
      %v530 = vadd.f32 0.0, %v529
      %531 = vdwg.mxu0
      %532 = vmatprep.subr.mxu0 %v350
      %533 = vmatpush1.msra.mxu0 %v349
      %534 = vmatprep.subr.mxu0 %v348
      %535 = vmatpush1.msra.mxu0 %v347
      %536 = vmatprep.subr.mxu0 %v346
      %537 = vmatpush1.msra.mxu0 %v345
      %538 = vmatprep.subr.mxu0 %v344
      %539 = vmatpush1.msra.mxu0 %v343
      %540 = vmatprep.subr.mxu0 %v342
      %541 = vmatpush1.msra.mxu0 %v341
      %542 = vmatprep.subr.mxu0 %v340
      %543 = vmatpush1.msra.mxu0 %v339
      %544 = vmatprep.subr.mxu0 %v338
      %545 = vmatpush1.msra.mxu0 %v337
      %546 = vmatprep.subr.mxu0 %v336
      %547 = vmatpush1.msra.mxu0 %v335
      %548 = vmatprep.subr.mxu0 %v334
      %549 = vmatpush1.msra.mxu0 %v333
      %550 = vmatprep.subr.mxu0 %v332
      %551 = vmatpush1.msra.mxu0 %v331
      %552 = vmatprep.subr.mxu0 %v330
      %553 = vmatpush1.msra.mxu0 %v329
      %554 = vmatprep.subr.mxu0 %v328
      %555 = vmatpush1.msra.mxu0 %v327
      %556 = vmatprep.subr.mxu0 %v326
      %557 = vmatpush1.msra.mxu0 %v325
      %558 = vmatprep.subr.mxu0 %v324
      %559 = vmatpush1.msra.mxu0 %v323
      %560 = vmatprep.subr.mxu0 %v322
      %561 = vmatpush1.msra.mxu0 %v321
      %562 = vmatprep.subr.mxu0 %v320
      %563 = vmatpush1.msra.mxu0 %v319
      %564 = vmatprep.subr.mxu0 %v382
      %565 = vmatpush2.msra.mxu0 %v381
      %566 = vmatprep.subr.mxu0 %v380
      %567 = vmatpush2.msra.mxu0 %v379
      %568 = vmatprep.subr.mxu0 %v378
      %569 = vmatpush2.msra.mxu0 %v377
      %570 = vmatprep.subr.mxu0 %v376
      %571 = vmatpush2.msra.mxu0 %v375
      %572 = vmatprep.subr.mxu0 %v374
      %573 = vmatpush2.msra.mxu0 %v373
      %574 = vmatprep.subr.mxu0 %v372
      %575 = vmatpush2.msra.mxu0 %v371
      %576 = vmatprep.subr.mxu0 %v370
      %577 = vmatpush2.msra.mxu0 %v369
      %578 = vmatprep.subr.mxu0 %v368
      %579 = vmatpush2.msra.mxu0 %v367
      %580 = vmatprep.subr.mxu0 %v366
      %581 = vmatpush2.msra.mxu0 %v365
      %582 = vmatprep.subr.mxu0 %v364
      %583 = vmatpush2.msra.mxu0 %v363
      %584 = vmatprep.subr.mxu0 %v362
      %585 = vmatpush2.msra.mxu0 %v361
      %586 = vmatprep.subr.mxu0 %v360
      %587 = vmatpush2.msra.mxu0 %v359
      %588 = vmatprep.subr.mxu0 %v358
      %589 = vmatpush2.msra.mxu0 %v357
      %590 = vmatprep.subr.mxu0 %v356
      %591 = vmatpush2.msra.mxu0 %v355
      %592 = vmatprep.subr.mxu0 %v354
      %593 = vmatpush2.msra.mxu0 %v353
      %594 = vmatprep.subr.mxu0 %v352
      %595 = vmatpush2.msra.mxu0 %v351
      %596 = vmatprep.mubr.f32.mxu0 %v316
      %597 = vmatmul.mubr.f32.gmra.mxu0 %v315
      %v598 = vpop.f32.mrf.mxu0
      %v599 = vadd.f32 %v528, %v598
      %v600 = vpop.f32.mrf.mxu0
      %v601 = vadd.f32 %v530, %v600
      %602 = vdwg.mxu0
      %s603 = scalar_lea.vmem %s1, 1024
      %v604 = vld [vmem:[%s603] sm:$0xff]
      %v605 = vld [vmem:[%s603 + $0x8] sm:$0xff]
      %v606 = vld [vmem:[%s603 + $0x10] sm:$0xff]
      %v607 = vld [vmem:[%s603 + $0x18] sm:$0xff]
      %v608 = vld [vmem:[%s603 + $0x20] sm:$0xff]
      %v609 = vld [vmem:[%s603 + $0x28] sm:$0xff]
      %v610 = vld [vmem:[%s603 + $0x30] sm:$0xff]
      %v611 = vld [vmem:[%s603 + $0x38] sm:$0xff]
      %v612 = vld [vmem:[%s603 + $0x40] sm:$0xff]
      %v613 = vld [vmem:[%s603 + $0x48] sm:$0xff]
      %v614 = vld [vmem:[%s603 + $0x50] sm:$0xff]
      %v615 = vld [vmem:[%s603 + $0x58] sm:$0xff]
      %v616 = vld [vmem:[%s603 + $0x60] sm:$0xff]
      %v617 = vld [vmem:[%s603 + $0x68] sm:$0xff]
      %v618 = vld [vmem:[%s603 + $0x70] sm:$0xff]
      %v619 = vld [vmem:[%s603 + $0x78] sm:$0xff]
      %v620 = vld [vmem:[%s603 + $0x80] sm:$0xff]
      %v621 = vld [vmem:[%s603 + $0x88] sm:$0xff]
      %v622 = vld [vmem:[%s603 + $0x90] sm:$0xff]
      %v623 = vld [vmem:[%s603 + $0x98] sm:$0xff]
      %v624 = vld [vmem:[%s603 + $0xa0] sm:$0xff]
      %v625 = vld [vmem:[%s603 + $0xa8] sm:$0xff]
      %v626 = vld [vmem:[%s603 + $0xb0] sm:$0xff]
      %v627 = vld [vmem:[%s603 + $0xb8] sm:$0xff]
      %v628 = vld [vmem:[%s603 + $0xc0] sm:$0xff]
      %v629 = vld [vmem:[%s603 + $0xc8] sm:$0xff]
      %v630 = vld [vmem:[%s603 + $0xd0] sm:$0xff]
      %v631 = vld [vmem:[%s603 + $0xd8] sm:$0xff]
      %v632 = vld [vmem:[%s603 + $0xe0] sm:$0xff]
      %v633 = vld [vmem:[%s603 + $0xe8] sm:$0xff]
      %v634 = vld [vmem:[%s603 + $0xf0] sm:$0xff]
      %v635 = vld [vmem:[%s603 + $0xf8] sm:$0xff]
      %v636 = vld [vmem:[%s603 + $0x100] sm:$0xff]
      %v637 = vld [vmem:[%s603 + $0x108] sm:$0xff]
      %v638 = vld [vmem:[%s603 + $0x110] sm:$0xff]
      %v639 = vld [vmem:[%s603 + $0x118] sm:$0xff]
      %v640 = vld [vmem:[%s603 + $0x120] sm:$0xff]
      %v641 = vld [vmem:[%s603 + $0x128] sm:$0xff]
      %v642 = vld [vmem:[%s603 + $0x130] sm:$0xff]
      %v643 = vld [vmem:[%s603 + $0x138] sm:$0xff]
      %v644 = vld [vmem:[%s603 + $0x140] sm:$0xff]
      %v645 = vld [vmem:[%s603 + $0x148] sm:$0xff]
      %v646 = vld [vmem:[%s603 + $0x150] sm:$0xff]
      %v647 = vld [vmem:[%s603 + $0x158] sm:$0xff]
      %v648 = vld [vmem:[%s603 + $0x160] sm:$0xff]
      %v649 = vld [vmem:[%s603 + $0x168] sm:$0xff]
      %v650 = vld [vmem:[%s603 + $0x170] sm:$0xff]
      %v651 = vld [vmem:[%s603 + $0x178] sm:$0xff]
      %v652 = vld [vmem:[%s603 + $0x180] sm:$0xff]
      %v653 = vld [vmem:[%s603 + $0x188] sm:$0xff]
      %v654 = vld [vmem:[%s603 + $0x190] sm:$0xff]
      %v655 = vld [vmem:[%s603 + $0x198] sm:$0xff]
      %v656 = vld [vmem:[%s603 + $0x1a0] sm:$0xff]
      %v657 = vld [vmem:[%s603 + $0x1a8] sm:$0xff]
      %v658 = vld [vmem:[%s603 + $0x1b0] sm:$0xff]
      %v659 = vld [vmem:[%s603 + $0x1b8] sm:$0xff]
      %v660 = vld [vmem:[%s603 + $0x1c0] sm:$0xff]
      %v661 = vld [vmem:[%s603 + $0x1c8] sm:$0xff]
      %v662 = vld [vmem:[%s603 + $0x1d0] sm:$0xff]
      %v663 = vld [vmem:[%s603 + $0x1d8] sm:$0xff]
      %v664 = vld [vmem:[%s603 + $0x1e0] sm:$0xff]
      %v665 = vld [vmem:[%s603 + $0x1e8] sm:$0xff]
      %v666 = vld [vmem:[%s603 + $0x1f0] sm:$0xff]
      %v667 = vld [vmem:[%s603 + $0x1f8] sm:$0xff]
      %vm668 = vcmask 1045504
      %v669 = vrot.slane %v315, 2
      %v670 = vrot.slane %v317, 2
      %v671 = vsel %vm668, %v669, %v670
      %v672 = vrot.slane %v316, 2
      %v673 = vrot.slane %v318, 2
      %v674 = vsel %vm668, %v672, %v673
      %677 = vmatprep.subr.mxu0 %v635
      %678 = vmatpush1.msra.mxu0 %v634
      %679 = vmatprep.subr.mxu0 %v633
      %680 = vmatpush1.msra.mxu0 %v632
      %681 = vmatprep.subr.mxu0 %v631
      %682 = vmatpush1.msra.mxu0 %v630
      %683 = vmatprep.subr.mxu0 %v629
      %684 = vmatpush1.msra.mxu0 %v628
      %685 = vmatprep.subr.mxu0 %v627
      %686 = vmatpush1.msra.mxu0 %v626
      %687 = vmatprep.subr.mxu0 %v625
      %688 = vmatpush1.msra.mxu0 %v624
      %689 = vmatprep.subr.mxu0 %v623
      %690 = vmatpush1.msra.mxu0 %v622
      %691 = vmatprep.subr.mxu0 %v621
      %692 = vmatpush1.msra.mxu0 %v620
      %693 = vmatprep.subr.mxu0 %v619
      %694 = vmatpush1.msra.mxu0 %v618
      %695 = vmatprep.subr.mxu0 %v617
      %696 = vmatpush1.msra.mxu0 %v616
      %697 = vmatprep.subr.mxu0 %v615
      %698 = vmatpush1.msra.mxu0 %v614
      %699 = vmatprep.subr.mxu0 %v613
      %700 = vmatpush1.msra.mxu0 %v612
      %701 = vmatprep.subr.mxu0 %v611
      %702 = vmatpush1.msra.mxu0 %v610
      %703 = vmatprep.subr.mxu0 %v609
      %704 = vmatpush1.msra.mxu0 %v608
      %705 = vmatprep.subr.mxu0 %v607
      %706 = vmatpush1.msra.mxu0 %v606
      %707 = vmatprep.subr.mxu0 %v605
      %708 = vmatpush1.msra.mxu0 %v604
      %709 = vmatprep.subr.mxu0 %v667
      %710 = vmatpush2.msra.mxu0 %v666
      %711 = vmatprep.subr.mxu0 %v665
      %712 = vmatpush2.msra.mxu0 %v664
      %713 = vmatprep.subr.mxu0 %v663
      %714 = vmatpush2.msra.mxu0 %v662
      %715 = vmatprep.subr.mxu0 %v661
      %716 = vmatpush2.msra.mxu0 %v660
      %717 = vmatprep.subr.mxu0 %v659
      %718 = vmatpush2.msra.mxu0 %v658
      %719 = vmatprep.subr.mxu0 %v657
      %720 = vmatpush2.msra.mxu0 %v656
      %721 = vmatprep.subr.mxu0 %v655
      %722 = vmatpush2.msra.mxu0 %v654
      %723 = vmatprep.subr.mxu0 %v653
      %724 = vmatpush2.msra.mxu0 %v652
      %725 = vmatprep.subr.mxu0 %v651
      %726 = vmatpush2.msra.mxu0 %v650
      %727 = vmatprep.subr.mxu0 %v649
      %728 = vmatpush2.msra.mxu0 %v648
      %729 = vmatprep.subr.mxu0 %v647
      %730 = vmatpush2.msra.mxu0 %v646
      %731 = vmatprep.subr.mxu0 %v645
      %732 = vmatpush2.msra.mxu0 %v644
      %733 = vmatprep.subr.mxu0 %v643
      %734 = vmatpush2.msra.mxu0 %v642
      %735 = vmatprep.subr.mxu0 %v641
      %736 = vmatpush2.msra.mxu0 %v640
      %737 = vmatprep.subr.mxu0 %v639
      %738 = vmatpush2.msra.mxu0 %v638
      %739 = vmatprep.subr.mxu0 %v637
      %740 = vmatpush2.msra.mxu0 %v636
      %741 = vmatprep.mubr.f32.mxu0 %v674
      %742 = vmatmul.mubr.f32.gmra.mxu0 %v671
      %v743 = vpop.f32.mrf.mxu0
      %v744 = vadd.f32 0.0, %v743
      %v745 = vpop.f32.mrf.mxu0
      %v746 = vadd.f32 0.0, %v745
      %747 = vdwg.mxu0
      %v748 = vadd.f32 %v599, %v744
      %v749 = vadd.f32 %v601, %v746
      %v750 = vld [vmem:[%s4] sm:$0x3]
      %v752 = vlaneseq
      %v753 = vshrl.u32 %v752, 7
      %v754 = vsub.s32 0, %v753
      %v755 = vrot.slane %v750, %v754
      %v756 = vlaneseq
      %v757 = vshrl.u32 %v756, 7
      %v758 = vsub.s32 1, %v757
      %v759 = vrot.slane %v750, %v758
      %v762 = vadd.f32 %v748, %v755
      %v763 = vadd.f32 %v749, %v759
      %v764 = vmax.f32 %v762, 0.0
      %v765 = vmax.f32 %v763, 0.0
      %v768 = vrot.slane %v764, 7
      %v769 = vrot.slane %v765, 7
      %v772 = vsel %vm314, 0.0, %v768
      %v773 = vsel %vm314, 0.0, %v769
      %v774 = vsel %vm314, %v768, 0.0
      %v775 = vsel %vm314, %v769, 0.0
      %v776 = vld [vmem:[%s2] sm:$0xff]
      %v777 = vld [vmem:[%s2 + $0x8] sm:$0xff]
      %v778 = vld [vmem:[%s2 + $0x10] sm:$0xff]
      %v779 = vld [vmem:[%s2 + $0x18] sm:$0xff]
      %v780 = vld [vmem:[%s2 + $0x20] sm:$0xff]
      %v781 = vld [vmem:[%s2 + $0x28] sm:$0xff]
      %v782 = vld [vmem:[%s2 + $0x30] sm:$0xff]
      %v783 = vld [vmem:[%s2 + $0x38] sm:$0xff]
      %v784 = vld [vmem:[%s2 + $0x40] sm:$0xff]
      %v785 = vld [vmem:[%s2 + $0x48] sm:$0xff]
      %v786 = vld [vmem:[%s2 + $0x50] sm:$0xff]
      %v787 = vld [vmem:[%s2 + $0x58] sm:$0xff]
      %v788 = vld [vmem:[%s2 + $0x60] sm:$0xff]
      %v789 = vld [vmem:[%s2 + $0x68] sm:$0xff]
      %v790 = vld [vmem:[%s2 + $0x70] sm:$0xff]
      %v791 = vld [vmem:[%s2 + $0x78] sm:$0xff]
      %v792 = vld [vmem:[%s2 + $0x80] sm:$0xff]
      %v793 = vld [vmem:[%s2 + $0x88] sm:$0xff]
      %v794 = vld [vmem:[%s2 + $0x90] sm:$0xff]
      %v795 = vld [vmem:[%s2 + $0x98] sm:$0xff]
      %v796 = vld [vmem:[%s2 + $0xa0] sm:$0xff]
      %v797 = vld [vmem:[%s2 + $0xa8] sm:$0xff]
      %v798 = vld [vmem:[%s2 + $0xb0] sm:$0xff]
      %v799 = vld [vmem:[%s2 + $0xb8] sm:$0xff]
      %v800 = vld [vmem:[%s2 + $0xc0] sm:$0xff]
      %v801 = vld [vmem:[%s2 + $0xc8] sm:$0xff]
      %v802 = vld [vmem:[%s2 + $0xd0] sm:$0xff]
      %v803 = vld [vmem:[%s2 + $0xd8] sm:$0xff]
      %v804 = vld [vmem:[%s2 + $0xe0] sm:$0xff]
      %v805 = vld [vmem:[%s2 + $0xe8] sm:$0xff]
      %v806 = vld [vmem:[%s2 + $0xf0] sm:$0xff]
      %v807 = vld [vmem:[%s2 + $0xf8] sm:$0xff]
      %v808 = vld [vmem:[%s2 + $0x100] sm:$0xff]
      %v809 = vld [vmem:[%s2 + $0x108] sm:$0xff]
      %v810 = vld [vmem:[%s2 + $0x110] sm:$0xff]
      %v811 = vld [vmem:[%s2 + $0x118] sm:$0xff]
      %v812 = vld [vmem:[%s2 + $0x120] sm:$0xff]
      %v813 = vld [vmem:[%s2 + $0x128] sm:$0xff]
      %v814 = vld [vmem:[%s2 + $0x130] sm:$0xff]
      %v815 = vld [vmem:[%s2 + $0x138] sm:$0xff]
      %v816 = vld [vmem:[%s2 + $0x140] sm:$0xff]
      %v817 = vld [vmem:[%s2 + $0x148] sm:$0xff]
      %v818 = vld [vmem:[%s2 + $0x150] sm:$0xff]
      %v819 = vld [vmem:[%s2 + $0x158] sm:$0xff]
      %v820 = vld [vmem:[%s2 + $0x160] sm:$0xff]
      %v821 = vld [vmem:[%s2 + $0x168] sm:$0xff]
      %v822 = vld [vmem:[%s2 + $0x170] sm:$0xff]
      %v823 = vld [vmem:[%s2 + $0x178] sm:$0xff]
      %v824 = vld [vmem:[%s2 + $0x180] sm:$0xff]
      %v825 = vld [vmem:[%s2 + $0x188] sm:$0xff]
      %v826 = vld [vmem:[%s2 + $0x190] sm:$0xff]
      %v827 = vld [vmem:[%s2 + $0x198] sm:$0xff]
      %v828 = vld [vmem:[%s2 + $0x1a0] sm:$0xff]
      %v829 = vld [vmem:[%s2 + $0x1a8] sm:$0xff]
      %v830 = vld [vmem:[%s2 + $0x1b0] sm:$0xff]
      %v831 = vld [vmem:[%s2 + $0x1b8] sm:$0xff]
      %v832 = vld [vmem:[%s2 + $0x1c0] sm:$0xff]
      %v833 = vld [vmem:[%s2 + $0x1c8] sm:$0xff]
      %v834 = vld [vmem:[%s2 + $0x1d0] sm:$0xff]
      %v835 = vld [vmem:[%s2 + $0x1d8] sm:$0xff]
      %v836 = vld [vmem:[%s2 + $0x1e0] sm:$0xff]
      %v837 = vld [vmem:[%s2 + $0x1e8] sm:$0xff]
      %v838 = vld [vmem:[%s2 + $0x1f0] sm:$0xff]
      %v839 = vld [vmem:[%s2 + $0x1f8] sm:$0xff]
      %s840 = scalar_lea.vmem %s2, 512
      %v841 = vld [vmem:[%s840] sm:$0xff]
      %v842 = vld [vmem:[%s840 + $0x8] sm:$0xff]
      %v843 = vld [vmem:[%s840 + $0x10] sm:$0xff]
      %v844 = vld [vmem:[%s840 + $0x18] sm:$0xff]
      %v845 = vld [vmem:[%s840 + $0x20] sm:$0xff]
      %v846 = vld [vmem:[%s840 + $0x28] sm:$0xff]
      %v847 = vld [vmem:[%s840 + $0x30] sm:$0xff]
      %v848 = vld [vmem:[%s840 + $0x38] sm:$0xff]
      %v849 = vld [vmem:[%s840 + $0x40] sm:$0xff]
      %v850 = vld [vmem:[%s840 + $0x48] sm:$0xff]
      %v851 = vld [vmem:[%s840 + $0x50] sm:$0xff]
      %v852 = vld [vmem:[%s840 + $0x58] sm:$0xff]
      %v853 = vld [vmem:[%s840 + $0x60] sm:$0xff]
      %v854 = vld [vmem:[%s840 + $0x68] sm:$0xff]
      %v855 = vld [vmem:[%s840 + $0x70] sm:$0xff]
      %v856 = vld [vmem:[%s840 + $0x78] sm:$0xff]
      %v857 = vld [vmem:[%s840 + $0x80] sm:$0xff]
      %v858 = vld [vmem:[%s840 + $0x88] sm:$0xff]
      %v859 = vld [vmem:[%s840 + $0x90] sm:$0xff]
      %v860 = vld [vmem:[%s840 + $0x98] sm:$0xff]
      %v861 = vld [vmem:[%s840 + $0xa0] sm:$0xff]
      %v862 = vld [vmem:[%s840 + $0xa8] sm:$0xff]
      %v863 = vld [vmem:[%s840 + $0xb0] sm:$0xff]
      %v864 = vld [vmem:[%s840 + $0xb8] sm:$0xff]
      %v865 = vld [vmem:[%s840 + $0xc0] sm:$0xff]
      %v866 = vld [vmem:[%s840 + $0xc8] sm:$0xff]
      %v867 = vld [vmem:[%s840 + $0xd0] sm:$0xff]
      %v868 = vld [vmem:[%s840 + $0xd8] sm:$0xff]
      %v869 = vld [vmem:[%s840 + $0xe0] sm:$0xff]
      %v870 = vld [vmem:[%s840 + $0xe8] sm:$0xff]
      %v871 = vld [vmem:[%s840 + $0xf0] sm:$0xff]
      %v872 = vld [vmem:[%s840 + $0xf8] sm:$0xff]
      %v873 = vld [vmem:[%s840 + $0x100] sm:$0xff]
      %v874 = vld [vmem:[%s840 + $0x108] sm:$0xff]
      %v875 = vld [vmem:[%s840 + $0x110] sm:$0xff]
      %v876 = vld [vmem:[%s840 + $0x118] sm:$0xff]
      %v877 = vld [vmem:[%s840 + $0x120] sm:$0xff]
      %v878 = vld [vmem:[%s840 + $0x128] sm:$0xff]
      %v879 = vld [vmem:[%s840 + $0x130] sm:$0xff]
      %v880 = vld [vmem:[%s840 + $0x138] sm:$0xff]
      %v881 = vld [vmem:[%s840 + $0x140] sm:$0xff]
      %v882 = vld [vmem:[%s840 + $0x148] sm:$0xff]
      %v883 = vld [vmem:[%s840 + $0x150] sm:$0xff]
      %v884 = vld [vmem:[%s840 + $0x158] sm:$0xff]
      %v885 = vld [vmem:[%s840 + $0x160] sm:$0xff]
      %v886 = vld [vmem:[%s840 + $0x168] sm:$0xff]
      %v887 = vld [vmem:[%s840 + $0x170] sm:$0xff]
      %v888 = vld [vmem:[%s840 + $0x178] sm:$0xff]
      %v889 = vld [vmem:[%s840 + $0x180] sm:$0xff]
      %v890 = vld [vmem:[%s840 + $0x188] sm:$0xff]
      %v891 = vld [vmem:[%s840 + $0x190] sm:$0xff]
      %v892 = vld [vmem:[%s840 + $0x198] sm:$0xff]
      %v893 = vld [vmem:[%s840 + $0x1a0] sm:$0xff]
      %v894 = vld [vmem:[%s840 + $0x1a8] sm:$0xff]
      %v895 = vld [vmem:[%s840 + $0x1b0] sm:$0xff]
      %v896 = vld [vmem:[%s840 + $0x1b8] sm:$0xff]
      %v897 = vld [vmem:[%s840 + $0x1c0] sm:$0xff]
      %v898 = vld [vmem:[%s840 + $0x1c8] sm:$0xff]
      %v899 = vld [vmem:[%s840 + $0x1d0] sm:$0xff]
      %v900 = vld [vmem:[%s840 + $0x1d8] sm:$0xff]
      %v901 = vld [vmem:[%s840 + $0x1e0] sm:$0xff]
      %v902 = vld [vmem:[%s840 + $0x1e8] sm:$0xff]
      %v903 = vld [vmem:[%s840 + $0x1f0] sm:$0xff]
      %v904 = vld [vmem:[%s840 + $0x1f8] sm:$0xff]
      %v909 = vrot.slane %v772, 1
      %v910 = vrot.slane %v774, 1
      %v911 = vsel %vm452, %v909, %v910
      %v912 = vrot.slane %v773, 1
      %v913 = vrot.slane %v775, 1
      %v914 = vsel %vm452, %v912, %v913
      %917 = vmatprep.subr.mxu0 %v872
      %918 = vmatpush1.msra.mxu0 %v871
      %919 = vmatprep.subr.mxu0 %v870
      %920 = vmatpush1.msra.mxu0 %v869
      %921 = vmatprep.subr.mxu0 %v868
      %922 = vmatpush1.msra.mxu0 %v867
      %923 = vmatprep.subr.mxu0 %v866
      %924 = vmatpush1.msra.mxu0 %v865
      %925 = vmatprep.subr.mxu0 %v864
      %926 = vmatpush1.msra.mxu0 %v863
      %927 = vmatprep.subr.mxu0 %v862
      %928 = vmatpush1.msra.mxu0 %v861
      %929 = vmatprep.subr.mxu0 %v860
      %930 = vmatpush1.msra.mxu0 %v859
      %931 = vmatprep.subr.mxu0 %v858
      %932 = vmatpush1.msra.mxu0 %v857
      %933 = vmatprep.subr.mxu0 %v856
      %934 = vmatpush1.msra.mxu0 %v855
      %935 = vmatprep.subr.mxu0 %v854
      %936 = vmatpush1.msra.mxu0 %v853
      %937 = vmatprep.subr.mxu0 %v852
      %938 = vmatpush1.msra.mxu0 %v851
      %939 = vmatprep.subr.mxu0 %v850
      %940 = vmatpush1.msra.mxu0 %v849
      %941 = vmatprep.subr.mxu0 %v848
      %942 = vmatpush1.msra.mxu0 %v847
      %943 = vmatprep.subr.mxu0 %v846
      %944 = vmatpush1.msra.mxu0 %v845
      %945 = vmatprep.subr.mxu0 %v844
      %946 = vmatpush1.msra.mxu0 %v843
      %947 = vmatprep.subr.mxu0 %v842
      %948 = vmatpush1.msra.mxu0 %v841
      %949 = vmatprep.subr.mxu0 %v904
      %950 = vmatpush2.msra.mxu0 %v903
      %951 = vmatprep.subr.mxu0 %v902
      %952 = vmatpush2.msra.mxu0 %v901
      %953 = vmatprep.subr.mxu0 %v900
      %954 = vmatpush2.msra.mxu0 %v899
      %955 = vmatprep.subr.mxu0 %v898
      %956 = vmatpush2.msra.mxu0 %v897
      %957 = vmatprep.subr.mxu0 %v896
      %958 = vmatpush2.msra.mxu0 %v895
      %959 = vmatprep.subr.mxu0 %v894
      %960 = vmatpush2.msra.mxu0 %v893
      %961 = vmatprep.subr.mxu0 %v892
      %962 = vmatpush2.msra.mxu0 %v891
      %963 = vmatprep.subr.mxu0 %v890
      %964 = vmatpush2.msra.mxu0 %v889
      %965 = vmatprep.subr.mxu0 %v888
      %966 = vmatpush2.msra.mxu0 %v887
      %967 = vmatprep.subr.mxu0 %v886
      %968 = vmatpush2.msra.mxu0 %v885
      %969 = vmatprep.subr.mxu0 %v884
      %970 = vmatpush2.msra.mxu0 %v883
      %971 = vmatprep.subr.mxu0 %v882
      %972 = vmatpush2.msra.mxu0 %v881
      %973 = vmatprep.subr.mxu0 %v880
      %974 = vmatpush2.msra.mxu0 %v879
      %975 = vmatprep.subr.mxu0 %v878
      %976 = vmatpush2.msra.mxu0 %v877
      %977 = vmatprep.subr.mxu0 %v876
      %978 = vmatpush2.msra.mxu0 %v875
      %979 = vmatprep.subr.mxu0 %v874
      %980 = vmatpush2.msra.mxu0 %v873
      %981 = vmatprep.mubr.f32.mxu0 %v914
      %982 = vmatmul.mubr.f32.gmra.mxu0 %v911
      %v983 = vpop.f32.mrf.mxu0
      %v984 = vadd.f32 0.0, %v983
      %v985 = vpop.f32.mrf.mxu0
      %v986 = vadd.f32 0.0, %v985
      %987 = vdwg.mxu0
      %988 = vmatprep.subr.mxu0 %v807
      %989 = vmatpush1.msra.mxu0 %v806
      %990 = vmatprep.subr.mxu0 %v805
      %991 = vmatpush1.msra.mxu0 %v804
      %992 = vmatprep.subr.mxu0 %v803
      %993 = vmatpush1.msra.mxu0 %v802
      %994 = vmatprep.subr.mxu0 %v801
      %995 = vmatpush1.msra.mxu0 %v800
      %996 = vmatprep.subr.mxu0 %v799
      %997 = vmatpush1.msra.mxu0 %v798
      %998 = vmatprep.subr.mxu0 %v797
      %999 = vmatpush1.msra.mxu0 %v796
      %1000 = vmatprep.subr.mxu0 %v795
      %1001 = vmatpush1.msra.mxu0 %v794
      %1002 = vmatprep.subr.mxu0 %v793
      %1003 = vmatpush1.msra.mxu0 %v792
      %1004 = vmatprep.subr.mxu0 %v791
      %1005 = vmatpush1.msra.mxu0 %v790
      %1006 = vmatprep.subr.mxu0 %v789
      %1007 = vmatpush1.msra.mxu0 %v788
      %1008 = vmatprep.subr.mxu0 %v787
      %1009 = vmatpush1.msra.mxu0 %v786
      %1010 = vmatprep.subr.mxu0 %v785
      %1011 = vmatpush1.msra.mxu0 %v784
      %1012 = vmatprep.subr.mxu0 %v783
      %1013 = vmatpush1.msra.mxu0 %v782
      %1014 = vmatprep.subr.mxu0 %v781
      %1015 = vmatpush1.msra.mxu0 %v780
      %1016 = vmatprep.subr.mxu0 %v779
      %1017 = vmatpush1.msra.mxu0 %v778
      %1018 = vmatprep.subr.mxu0 %v777
      %1019 = vmatpush1.msra.mxu0 %v776
      %1020 = vmatprep.subr.mxu0 %v839
      %1021 = vmatpush2.msra.mxu0 %v838
      %1022 = vmatprep.subr.mxu0 %v837
      %1023 = vmatpush2.msra.mxu0 %v836
      %1024 = vmatprep.subr.mxu0 %v835
      %1025 = vmatpush2.msra.mxu0 %v834
      %1026 = vmatprep.subr.mxu0 %v833
      %1027 = vmatpush2.msra.mxu0 %v832
      %1028 = vmatprep.subr.mxu0 %v831
      %1029 = vmatpush2.msra.mxu0 %v830
      %1030 = vmatprep.subr.mxu0 %v829
      %1031 = vmatpush2.msra.mxu0 %v828
      %1032 = vmatprep.subr.mxu0 %v827
      %1033 = vmatpush2.msra.mxu0 %v826
      %1034 = vmatprep.subr.mxu0 %v825
      %1035 = vmatpush2.msra.mxu0 %v824
      %1036 = vmatprep.subr.mxu0 %v823
      %1037 = vmatpush2.msra.mxu0 %v822
      %1038 = vmatprep.subr.mxu0 %v821
      %1039 = vmatpush2.msra.mxu0 %v820
      %1040 = vmatprep.subr.mxu0 %v819
      %1041 = vmatpush2.msra.mxu0 %v818
      %1042 = vmatprep.subr.mxu0 %v817
      %1043 = vmatpush2.msra.mxu0 %v816
      %1044 = vmatprep.subr.mxu0 %v815
      %1045 = vmatpush2.msra.mxu0 %v814
      %1046 = vmatprep.subr.mxu0 %v813
      %1047 = vmatpush2.msra.mxu0 %v812
      %1048 = vmatprep.subr.mxu0 %v811
      %1049 = vmatpush2.msra.mxu0 %v810
      %1050 = vmatprep.subr.mxu0 %v809
      %1051 = vmatpush2.msra.mxu0 %v808
      %1052 = vmatprep.mubr.f32.mxu0 %v773
      %1053 = vmatmul.mubr.f32.gmra.mxu0 %v772
      %v1054 = vpop.f32.mrf.mxu0
      %v1055 = vadd.f32 %v984, %v1054
      %v1056 = vpop.f32.mrf.mxu0
      %v1057 = vadd.f32 %v986, %v1056
      %1058 = vdwg.mxu0
      %s1059 = scalar_lea.vmem %s2, 1024
      %v1060 = vld [vmem:[%s1059] sm:$0xff]
      %v1061 = vld [vmem:[%s1059 + $0x8] sm:$0xff]
      %v1062 = vld [vmem:[%s1059 + $0x10] sm:$0xff]
      %v1063 = vld [vmem:[%s1059 + $0x18] sm:$0xff]
      %v1064 = vld [vmem:[%s1059 + $0x20] sm:$0xff]
      %v1065 = vld [vmem:[%s1059 + $0x28] sm:$0xff]
      %v1066 = vld [vmem:[%s1059 + $0x30] sm:$0xff]
      %v1067 = vld [vmem:[%s1059 + $0x38] sm:$0xff]
      %v1068 = vld [vmem:[%s1059 + $0x40] sm:$0xff]
      %v1069 = vld [vmem:[%s1059 + $0x48] sm:$0xff]
      %v1070 = vld [vmem:[%s1059 + $0x50] sm:$0xff]
      %v1071 = vld [vmem:[%s1059 + $0x58] sm:$0xff]
      %v1072 = vld [vmem:[%s1059 + $0x60] sm:$0xff]
      %v1073 = vld [vmem:[%s1059 + $0x68] sm:$0xff]
      %v1074 = vld [vmem:[%s1059 + $0x70] sm:$0xff]
      %v1075 = vld [vmem:[%s1059 + $0x78] sm:$0xff]
      %v1076 = vld [vmem:[%s1059 + $0x80] sm:$0xff]
      %v1077 = vld [vmem:[%s1059 + $0x88] sm:$0xff]
      %v1078 = vld [vmem:[%s1059 + $0x90] sm:$0xff]
      %v1079 = vld [vmem:[%s1059 + $0x98] sm:$0xff]
      %v1080 = vld [vmem:[%s1059 + $0xa0] sm:$0xff]
      %v1081 = vld [vmem:[%s1059 + $0xa8] sm:$0xff]
      %v1082 = vld [vmem:[%s1059 + $0xb0] sm:$0xff]
      %v1083 = vld [vmem:[%s1059 + $0xb8] sm:$0xff]
      %v1084 = vld [vmem:[%s1059 + $0xc0] sm:$0xff]
      %v1085 = vld [vmem:[%s1059 + $0xc8] sm:$0xff]
      %v1086 = vld [vmem:[%s1059 + $0xd0] sm:$0xff]
      %v1087 = vld [vmem:[%s1059 + $0xd8] sm:$0xff]
      %v1088 = vld [vmem:[%s1059 + $0xe0] sm:$0xff]
      %v1089 = vld [vmem:[%s1059 + $0xe8] sm:$0xff]
      %v1090 = vld [vmem:[%s1059 + $0xf0] sm:$0xff]
      %v1091 = vld [vmem:[%s1059 + $0xf8] sm:$0xff]
      %v1092 = vld [vmem:[%s1059 + $0x100] sm:$0xff]
      %v1093 = vld [vmem:[%s1059 + $0x108] sm:$0xff]
      %v1094 = vld [vmem:[%s1059 + $0x110] sm:$0xff]
      %v1095 = vld [vmem:[%s1059 + $0x118] sm:$0xff]
      %v1096 = vld [vmem:[%s1059 + $0x120] sm:$0xff]
      %v1097 = vld [vmem:[%s1059 + $0x128] sm:$0xff]
      %v1098 = vld [vmem:[%s1059 + $0x130] sm:$0xff]
      %v1099 = vld [vmem:[%s1059 + $0x138] sm:$0xff]
      %v1100 = vld [vmem:[%s1059 + $0x140] sm:$0xff]
      %v1101 = vld [vmem:[%s1059 + $0x148] sm:$0xff]
      %v1102 = vld [vmem:[%s1059 + $0x150] sm:$0xff]
      %v1103 = vld [vmem:[%s1059 + $0x158] sm:$0xff]
      %v1104 = vld [vmem:[%s1059 + $0x160] sm:$0xff]
      %v1105 = vld [vmem:[%s1059 + $0x168] sm:$0xff]
      %v1106 = vld [vmem:[%s1059 + $0x170] sm:$0xff]
      %v1107 = vld [vmem:[%s1059 + $0x178] sm:$0xff]
      %v1108 = vld [vmem:[%s1059 + $0x180] sm:$0xff]
      %v1109 = vld [vmem:[%s1059 + $0x188] sm:$0xff]
      %v1110 = vld [vmem:[%s1059 + $0x190] sm:$0xff]
      %v1111 = vld [vmem:[%s1059 + $0x198] sm:$0xff]
      %v1112 = vld [vmem:[%s1059 + $0x1a0] sm:$0xff]
      %v1113 = vld [vmem:[%s1059 + $0x1a8] sm:$0xff]
      %v1114 = vld [vmem:[%s1059 + $0x1b0] sm:$0xff]
      %v1115 = vld [vmem:[%s1059 + $0x1b8] sm:$0xff]
      %v1116 = vld [vmem:[%s1059 + $0x1c0] sm:$0xff]
      %v1117 = vld [vmem:[%s1059 + $0x1c8] sm:$0xff]
      %v1118 = vld [vmem:[%s1059 + $0x1d0] sm:$0xff]
      %v1119 = vld [vmem:[%s1059 + $0x1d8] sm:$0xff]
      %v1120 = vld [vmem:[%s1059 + $0x1e0] sm:$0xff]
      %v1121 = vld [vmem:[%s1059 + $0x1e8] sm:$0xff]
      %v1122 = vld [vmem:[%s1059 + $0x1f0] sm:$0xff]
      %v1123 = vld [vmem:[%s1059 + $0x1f8] sm:$0xff]
      %v1124 = vrot.slane %v772, 2
      %v1125 = vrot.slane %v774, 2
      %v1126 = vsel %vm668, %v1124, %v1125
      %v1127 = vrot.slane %v773, 2
      %v1128 = vrot.slane %v775, 2
      %v1129 = vsel %vm668, %v1127, %v1128
      %1132 = vmatprep.subr.mxu0 %v1091
      %1133 = vmatpush1.msra.mxu0 %v1090
      %1134 = vmatprep.subr.mxu0 %v1089
      %1135 = vmatpush1.msra.mxu0 %v1088
      %1136 = vmatprep.subr.mxu0 %v1087
      %1137 = vmatpush1.msra.mxu0 %v1086
      %1138 = vmatprep.subr.mxu0 %v1085
      %1139 = vmatpush1.msra.mxu0 %v1084
      %1140 = vmatprep.subr.mxu0 %v1083
      %1141 = vmatpush1.msra.mxu0 %v1082
      %1142 = vmatprep.subr.mxu0 %v1081
      %1143 = vmatpush1.msra.mxu0 %v1080
      %1144 = vmatprep.subr.mxu0 %v1079
      %1145 = vmatpush1.msra.mxu0 %v1078
      %1146 = vmatprep.subr.mxu0 %v1077
      %1147 = vmatpush1.msra.mxu0 %v1076
      %1148 = vmatprep.subr.mxu0 %v1075
      %1149 = vmatpush1.msra.mxu0 %v1074
      %1150 = vmatprep.subr.mxu0 %v1073
      %1151 = vmatpush1.msra.mxu0 %v1072
      %1152 = vmatprep.subr.mxu0 %v1071
      %1153 = vmatpush1.msra.mxu0 %v1070
      %1154 = vmatprep.subr.mxu0 %v1069
      %1155 = vmatpush1.msra.mxu0 %v1068
      %1156 = vmatprep.subr.mxu0 %v1067
      %1157 = vmatpush1.msra.mxu0 %v1066
      %1158 = vmatprep.subr.mxu0 %v1065
      %1159 = vmatpush1.msra.mxu0 %v1064
      %1160 = vmatprep.subr.mxu0 %v1063
      %1161 = vmatpush1.msra.mxu0 %v1062
      %1162 = vmatprep.subr.mxu0 %v1061
      %1163 = vmatpush1.msra.mxu0 %v1060
      %1164 = vmatprep.subr.mxu0 %v1123
      %1165 = vmatpush2.msra.mxu0 %v1122
      %1166 = vmatprep.subr.mxu0 %v1121
      %1167 = vmatpush2.msra.mxu0 %v1120
      %1168 = vmatprep.subr.mxu0 %v1119
      %1169 = vmatpush2.msra.mxu0 %v1118
      %1170 = vmatprep.subr.mxu0 %v1117
      %1171 = vmatpush2.msra.mxu0 %v1116
      %1172 = vmatprep.subr.mxu0 %v1115
      %1173 = vmatpush2.msra.mxu0 %v1114
      %1174 = vmatprep.subr.mxu0 %v1113
      %1175 = vmatpush2.msra.mxu0 %v1112
      %1176 = vmatprep.subr.mxu0 %v1111
      %1177 = vmatpush2.msra.mxu0 %v1110
      %1178 = vmatprep.subr.mxu0 %v1109
      %1179 = vmatpush2.msra.mxu0 %v1108
      %1180 = vmatprep.subr.mxu0 %v1107
      %1181 = vmatpush2.msra.mxu0 %v1106
      %1182 = vmatprep.subr.mxu0 %v1105
      %1183 = vmatpush2.msra.mxu0 %v1104
      %1184 = vmatprep.subr.mxu0 %v1103
      %1185 = vmatpush2.msra.mxu0 %v1102
      %1186 = vmatprep.subr.mxu0 %v1101
      %1187 = vmatpush2.msra.mxu0 %v1100
      %1188 = vmatprep.subr.mxu0 %v1099
      %1189 = vmatpush2.msra.mxu0 %v1098
      %1190 = vmatprep.subr.mxu0 %v1097
      %1191 = vmatpush2.msra.mxu0 %v1096
      %1192 = vmatprep.subr.mxu0 %v1095
      %1193 = vmatpush2.msra.mxu0 %v1094
      %1194 = vmatprep.subr.mxu0 %v1093
      %1195 = vmatpush2.msra.mxu0 %v1092
      %1196 = vmatprep.mubr.f32.mxu0 %v1129
      %1197 = vmatmul.mubr.f32.gmra.mxu0 %v1126
      %v1198 = vpop.f32.mrf.mxu0
      %v1199 = vadd.f32 0.0, %v1198
      %v1200 = vpop.f32.mrf.mxu0
      %v1201 = vadd.f32 0.0, %v1200
      %1202 = vdwg.mxu0
      %v1203 = vadd.f32 %v1055, %v1199
      %v1204 = vadd.f32 %v1057, %v1201
      %v1205 = vld [vmem:[%s5] sm:$0x3]
      %v1207 = vlaneseq
      %v1208 = vshrl.u32 %v1207, 7
      %v1209 = vsub.s32 0, %v1208
      %v1210 = vrot.slane %v1205, %v1209
      %v1211 = vlaneseq
      %v1212 = vshrl.u32 %v1211, 7
      %v1213 = vsub.s32 1, %v1212
      %v1214 = vrot.slane %v1205, %v1213
      %v1217 = vadd.f32 %v1203, %v1210
      %v1218 = vadd.f32 %v1204, %v1214
      %v1219 = vld [vmem:[%s6] sm:$0xf]
      %v1220 = vld [vmem:[%s7] sm:$0x1]
      %vm1221 = vcmask 523264
      %v1222 = vsel %vm1221, %v1217, 0.0
      %1223 = vadd.xlane.f32.xlu0 %v1222
      %v1224 = vpop.xlane.xlu0 %1223
      %v1225 = vrot.slane %v1224, 4
      %v1226 = vadd.f32 %v1224, %v1225
      %v1227 = vrot.slane %v1226, 2
      %v1228 = vadd.f32 %v1226, %v1227
      %v1229 = vrot.slane %v1228, 1
      %v1230 = vadd.f32 %v1228, %v1229
      %s1231 = vtos %v1230
      %v1232 = vstv %s1231
      %v1233 = vmul.f32 %v1232, 0.001953125
      %v1234 = vmul.f32 %v1233, %v1219
      %v1235 = vadd.f32 %v1234, 0.0
      %v1236 = vsel %vm1221, %v1217, -inf
      %1237 = vmax.xlane.f32.xlu0 %v1236
      %v1238 = vpop.xlane.xlu0 %1237
      %v1239 = vrot.slane %v1238, 4
      %v1240 = vmax.f32 %v1238, %v1239
      %v1241 = vrot.slane %v1240, 2
      %v1242 = vmax.f32 %v1240, %v1241
      %v1243 = vrot.slane %v1242, 1
      %v1244 = vmax.f32 %v1242, %v1243
      %s1245 = vtos %v1244
      %v1246 = vstv %s1245
      %v1247 = vmul.f32 %v1246, %v1219
      %v1248 = vadd.f32 %v1247, 0.0
      %1250 = vrot.lane.b32.xlu0 %v1217, 64
      %v1251 = vpop.permute.xlu0 %1250
      %v1253 = vsel %vm1221, %v1251, 0.0
      %1254 = vadd.xlane.f32.xlu0 %v1253
      %v1255 = vpop.xlane.xlu0 %1254
      %v1256 = vrot.slane %v1255, 4
      %v1257 = vadd.f32 %v1255, %v1256
      %v1258 = vrot.slane %v1257, 2
      %v1259 = vadd.f32 %v1257, %v1258
      %v1260 = vrot.slane %v1259, 1
      %v1261 = vadd.f32 %v1259, %v1260
      %s1262 = vtos %v1261
      %v1263 = vstv %s1262
      %v1264 = vmul.f32 %v1263, 0.001953125
      %v1265 = vmul.f32 %v1264, %v1219
      %v1267 = vrot.slane %v1265, 1
      %v1269 = vadd.f32 %v1235, %v1267
      %vm1270 = vcmask 1048064
      %v1271 = vsel %vm1270, %v1217, -inf
      %1272 = vmax.xlane.f32.xlu0 %v1271
      %v1273 = vpop.xlane.xlu0 %1272
      %v1274 = vrot.slane %v1273, 4
      %v1275 = vmax.f32 %v1273, %v1274
      %v1276 = vrot.slane %v1275, 2
      %v1277 = vmax.f32 %v1275, %v1276
      %v1278 = vrot.slane %v1277, 1
      %v1279 = vmax.f32 %v1277, %v1278
      %s1280 = vtos %v1279
      %v1281 = vstv %s1280
      %v1282 = vmul.f32 %v1281, %v1219
      %v1284 = vrot.slane %v1282, 1
      %v1286 = vadd.f32 %v1248, %v1284
      %v1287 = vsel %vm1221, %v1218, 0.0
      %1288 = vadd.xlane.f32.xlu0 %v1287
      %v1289 = vpop.xlane.xlu0 %1288
      %v1290 = vrot.slane %v1289, 4
      %v1291 = vadd.f32 %v1289, %v1290
      %v1292 = vrot.slane %v1291, 2
      %v1293 = vadd.f32 %v1291, %v1292
      %v1294 = vrot.slane %v1293, 1
      %v1295 = vadd.f32 %v1293, %v1294
      %s1296 = vtos %v1295
      %v1297 = vstv %s1296
      %v1298 = vmul.f32 %v1297, 0.001953125
      %v1299 = vmul.f32 %v1298, %v1219
      %v1301 = vrot.slane %v1299, 2
      %v1303 = vadd.f32 %v1269, %v1301
      %v1304 = vsel %vm1221, %v1218, -inf
      %1305 = vmax.xlane.f32.xlu0 %v1304
      %v1306 = vpop.xlane.xlu0 %1305
      %v1307 = vrot.slane %v1306, 4
      %v1308 = vmax.f32 %v1306, %v1307
      %v1309 = vrot.slane %v1308, 2
      %v1310 = vmax.f32 %v1308, %v1309
      %v1311 = vrot.slane %v1310, 1
      %v1312 = vmax.f32 %v1310, %v1311
      %s1313 = vtos %v1312
      %v1314 = vstv %s1313
      %v1315 = vmul.f32 %v1314, %v1219
      %v1317 = vrot.slane %v1315, 2
      %v1319 = vadd.f32 %v1286, %v1317
      %1321 = vrot.lane.b32.xlu0 %v1218, 64
      %v1322 = vpop.permute.xlu0 %1321
      %v1324 = vsel %vm1221, %v1322, 0.0
      %1325 = vadd.xlane.f32.xlu0 %v1324
      %v1326 = vpop.xlane.xlu0 %1325
      %v1327 = vrot.slane %v1326, 4
      %v1328 = vadd.f32 %v1326, %v1327
      %v1329 = vrot.slane %v1328, 2
      %v1330 = vadd.f32 %v1328, %v1329
      %v1331 = vrot.slane %v1330, 1
      %v1332 = vadd.f32 %v1330, %v1331
      %s1333 = vtos %v1332
      %v1334 = vstv %s1333
      %v1335 = vmul.f32 %v1334, 0.001953125
      %v1336 = vmul.f32 %v1335, %v1219
      %v1338 = vrot.slane %v1336, 3
      %v1340 = vadd.f32 %v1303, %v1338
      %v1341 = vsel %vm1270, %v1218, -inf
      %1342 = vmax.xlane.f32.xlu0 %v1341
      %v1343 = vpop.xlane.xlu0 %1342
      %v1344 = vrot.slane %v1343, 4
      %v1345 = vmax.f32 %v1343, %v1344
      %v1346 = vrot.slane %v1345, 2
      %v1347 = vmax.f32 %v1345, %v1346
      %v1348 = vrot.slane %v1347, 1
      %v1349 = vmax.f32 %v1347, %v1348
      %s1350 = vtos %v1349
      %v1351 = vstv %s1350
      %v1352 = vmul.f32 %v1351, %v1219
      %v1354 = vrot.slane %v1352, 3
      %v1356 = vadd.f32 %v1319, %v1354
      %v1357 = vmax.f32 %v1340, 0.0
      %v1358 = vmax.f32 %v1356, 0.0
      %v1359 = vadd.f32 %v1357, %v1358
      %1361 = vset.pattern.permute.xlu0 0
      %1362 = vperm.xlu0 %1361, %v1359
      %v1363 = vpop.permute.xlu0 %1362
      %v1365 = vmul.f32 %v1363, %v1220
      %v1366 = vadd.f32 %v1365, 0.0
      %v1367 = vxor.u32 %v1366, 2147483648
      %v1368 = vmul.f32 %v1367, 1.442695
      %v1369 = vpow.pop %v1368
      %v1370 = vadd.f32 %v1369, 1.0
      %v1371 = vrcp.pop %v1370
      %v1372 = vmul.f32 1.0, %v1371
      %s1374 = vtos %v1372
      %v1375 = vstv %s1374
      %v1377 = vmul.f32 %v1217, %v1375
      %1378 = vrot.lane.b32.xlu0 %v1372, 127
      %v1379 = vpop.permute.xlu0 %1378
      %s1380 = vtos %v1379
      %v1381 = vstv %s1380
      %v1383 = vmul.f32 %v1217, %v1381
      %1384 = vrot.lane.b32.xlu0 %v1372, 126
      %v1385 = vpop.permute.xlu0 %1384
      %s1386 = vtos %v1385
      %v1387 = vstv %s1386
      %v1389 = vmul.f32 %v1218, %v1387
      %1390 = vrot.lane.b32.xlu0 %v1372, 125
      %v1391 = vpop.permute.xlu0 %1390
      %s1392 = vtos %v1391
      %v1393 = vstv %s1392
      %v1395 = vmul.f32 %v1218, %v1393
      %1397 = vrot.lane.b32.xlu0 %v1383, 64
      %v1398 = vpop.permute.xlu0 %1397
      %v1400 = vadd.f32 %v1377, %v1398
      %v1401 = vmax.f32 %v1377, %v1398
      %v1402 = vadd.f32 %v1400, %v1389
      %v1403 = vmax.f32 %v1401, %v1389
      %1405 = vrot.lane.b32.xlu0 %v1395, 64
      %v1406 = vpop.permute.xlu0 %1405
      %v1408 = vadd.f32 %v1402, %v1406
      %v1409 = vmax.f32 %v1403, %v1406
      %v1410 = vmul.f32 %v1408, 0.25
      %1412 = vrot.lane.b32.xlu0 %v1409, 64
      %v1413 = vpop.permute.xlu0 %1412
      %v1415 = vsel %vm1221, %v1410, %v1413
      %v1417 = vrot.slane %v1415, 5
      %vm1419 = vcmask 1042432
      %v1420 = vsel %vm1419, 0.0, %v1417
      %v1421 = vsel %vm1419, %v1417, 0.0
      %v1422 = vld [vmem:[%s3] sm:$0xff]
      %v1423 = vld [vmem:[%s3 + $0x8] sm:$0xff]
      %v1424 = vld [vmem:[%s3 + $0x10] sm:$0xff]
      %v1425 = vld [vmem:[%s3 + $0x18] sm:$0xff]
      %v1426 = vld [vmem:[%s3 + $0x20] sm:$0xff]
      %v1427 = vld [vmem:[%s3 + $0x28] sm:$0xff]
      %v1428 = vld [vmem:[%s3 + $0x30] sm:$0xff]
      %v1429 = vld [vmem:[%s3 + $0x38] sm:$0xff]
      %v1430 = vld [vmem:[%s3 + $0x40] sm:$0xff]
      %v1431 = vld [vmem:[%s3 + $0x48] sm:$0xff]
      %v1432 = vld [vmem:[%s3 + $0x50] sm:$0xff]
      %v1433 = vld [vmem:[%s3 + $0x58] sm:$0xff]
      %v1434 = vld [vmem:[%s3 + $0x60] sm:$0xff]
      %v1435 = vld [vmem:[%s3 + $0x68] sm:$0xff]
      %v1436 = vld [vmem:[%s3 + $0x70] sm:$0xff]
      %v1437 = vld [vmem:[%s3 + $0x78] sm:$0xff]
      %s1438 = scalar_lea.vmem %s3, 128
      %v1439 = vld [vmem:[%s1438] sm:$0xff]
      %v1440 = vld [vmem:[%s1438 + $0x8] sm:$0xff]
      %v1441 = vld [vmem:[%s1438 + $0x10] sm:$0xff]
      %v1442 = vld [vmem:[%s1438 + $0x18] sm:$0xff]
      %v1443 = vld [vmem:[%s1438 + $0x20] sm:$0xff]
      %v1444 = vld [vmem:[%s1438 + $0x28] sm:$0xff]
      %v1445 = vld [vmem:[%s1438 + $0x30] sm:$0xff]
      %v1446 = vld [vmem:[%s1438 + $0x38] sm:$0xff]
      %v1447 = vld [vmem:[%s1438 + $0x40] sm:$0xff]
      %v1448 = vld [vmem:[%s1438 + $0x48] sm:$0xff]
      %v1449 = vld [vmem:[%s1438 + $0x50] sm:$0xff]
      %v1450 = vld [vmem:[%s1438 + $0x58] sm:$0xff]
      %v1451 = vld [vmem:[%s1438 + $0x60] sm:$0xff]
      %v1452 = vld [vmem:[%s1438 + $0x68] sm:$0xff]
      %v1453 = vld [vmem:[%s1438 + $0x70] sm:$0xff]
      %v1454 = vld [vmem:[%s1438 + $0x78] sm:$0xff]
      %v1457 = vrot.slane %v1420, 1
      %v1458 = vrot.slane %v1421, 1
      %v1459 = vsel %vm452, %v1457, %v1458
      %1461 = vmatprep.subr.mxu0 0.0
      %1462 = vmatpush1.msra.mxu0 %v1454
      %1463 = vmatprep.subr.mxu0 0.0
      %1464 = vmatpush1.msra.mxu0 %v1453
      %1465 = vmatprep.subr.mxu0 0.0
      %1466 = vmatpush1.msra.mxu0 %v1452
      %1467 = vmatprep.subr.mxu0 0.0
      %1468 = vmatpush1.msra.mxu0 %v1451
      %1469 = vmatprep.subr.mxu0 0.0
      %1470 = vmatpush1.msra.mxu0 %v1450
      %1471 = vmatprep.subr.mxu0 0.0
      %1472 = vmatpush1.msra.mxu0 %v1449
      %1473 = vmatprep.subr.mxu0 0.0
      %1474 = vmatpush1.msra.mxu0 %v1448
      %1475 = vmatprep.subr.mxu0 0.0
      %1476 = vmatpush1.msra.mxu0 %v1447
      %1477 = vmatprep.subr.mxu0 0.0
      %1478 = vmatpush1.msra.mxu0 %v1446
      %1479 = vmatprep.subr.mxu0 0.0
      %1480 = vmatpush1.msra.mxu0 %v1445
      %1481 = vmatprep.subr.mxu0 0.0
      %1482 = vmatpush1.msra.mxu0 %v1444
      %1483 = vmatprep.subr.mxu0 0.0
      %1484 = vmatpush1.msra.mxu0 %v1443
      %1485 = vmatprep.subr.mxu0 0.0
      %1486 = vmatpush1.msra.mxu0 %v1442
      %1487 = vmatprep.subr.mxu0 0.0
      %1488 = vmatpush1.msra.mxu0 %v1441
      %1489 = vmatprep.subr.mxu0 0.0
      %1490 = vmatpush1.msra.mxu0 %v1440
      %1491 = vmatprep.subr.mxu0 0.0
      %1492 = vmatpush1.msra.mxu0 %v1439
      %1493 = vmatprep.subr.mxu0 0.0
      %1494 = vmatpush2.msra.mxu0 0.0
      %1495 = vmatprep.subr.mxu0 0.0
      %1496 = vmatpush2.msra.mxu0 0.0
      %1497 = vmatprep.subr.mxu0 0.0
      %1498 = vmatpush2.msra.mxu0 0.0
      %1499 = vmatprep.subr.mxu0 0.0
      %1500 = vmatpush2.msra.mxu0 0.0
      %1501 = vmatprep.subr.mxu0 0.0
      %1502 = vmatpush2.msra.mxu0 0.0
      %1503 = vmatprep.subr.mxu0 0.0
      %1504 = vmatpush2.msra.mxu0 0.0
      %1505 = vmatprep.subr.mxu0 0.0
      %1506 = vmatpush2.msra.mxu0 0.0
      %1507 = vmatprep.subr.mxu0 0.0
      %1508 = vmatpush2.msra.mxu0 0.0
      %1509 = vmatprep.subr.mxu0 0.0
      %1510 = vmatpush2.msra.mxu0 0.0
      %1511 = vmatprep.subr.mxu0 0.0
      %1512 = vmatpush2.msra.mxu0 0.0
      %1513 = vmatprep.subr.mxu0 0.0
      %1514 = vmatpush2.msra.mxu0 0.0
      %1515 = vmatprep.subr.mxu0 0.0
      %1516 = vmatpush2.msra.mxu0 0.0
      %1517 = vmatprep.subr.mxu0 0.0
      %1518 = vmatpush2.msra.mxu0 0.0
      %1519 = vmatprep.subr.mxu0 0.0
      %1520 = vmatpush2.msra.mxu0 0.0
      %1521 = vmatprep.subr.mxu0 0.0
      %1522 = vmatpush2.msra.mxu0 0.0
      %1523 = vmatprep.subr.mxu0 0.0
      %1524 = vmatpush2.msra.mxu0 0.0
      %1525 = vmatprep.mubr.f32.mxu0 0.0
      %1526 = vmatmul.mubr.f32.gmra.mxu0 %v1459
      %v1527 = vpop.f32.mrf.mxu0
      %v1528 = vadd.f32 0.0, %v1527
      %v1529 = vpop.f32.mrf.mxu0
      %1530 = vdwg.mxu0
      %1531 = vmatprep.subr.mxu0 0.0
      %1532 = vmatpush1.msra.mxu0 %v1437
      %1533 = vmatprep.subr.mxu0 0.0
      %1534 = vmatpush1.msra.mxu0 %v1436
      %1535 = vmatprep.subr.mxu0 0.0
      %1536 = vmatpush1.msra.mxu0 %v1435
      %1537 = vmatprep.subr.mxu0 0.0
      %1538 = vmatpush1.msra.mxu0 %v1434
      %1539 = vmatprep.subr.mxu0 0.0
      %1540 = vmatpush1.msra.mxu0 %v1433
      %1541 = vmatprep.subr.mxu0 0.0
      %1542 = vmatpush1.msra.mxu0 %v1432
      %1543 = vmatprep.subr.mxu0 0.0
      %1544 = vmatpush1.msra.mxu0 %v1431
      %1545 = vmatprep.subr.mxu0 0.0
      %1546 = vmatpush1.msra.mxu0 %v1430
      %1547 = vmatprep.subr.mxu0 0.0
      %1548 = vmatpush1.msra.mxu0 %v1429
      %1549 = vmatprep.subr.mxu0 0.0
      %1550 = vmatpush1.msra.mxu0 %v1428
      %1551 = vmatprep.subr.mxu0 0.0
      %1552 = vmatpush1.msra.mxu0 %v1427
      %1553 = vmatprep.subr.mxu0 0.0
      %1554 = vmatpush1.msra.mxu0 %v1426
      %1555 = vmatprep.subr.mxu0 0.0
      %1556 = vmatpush1.msra.mxu0 %v1425
      %1557 = vmatprep.subr.mxu0 0.0
      %1558 = vmatpush1.msra.mxu0 %v1424
      %1559 = vmatprep.subr.mxu0 0.0
      %1560 = vmatpush1.msra.mxu0 %v1423
      %1561 = vmatprep.subr.mxu0 0.0
      %1562 = vmatpush1.msra.mxu0 %v1422
      %1563 = vmatprep.subr.mxu0 0.0
      %1564 = vmatpush2.msra.mxu0 0.0
      %1565 = vmatprep.subr.mxu0 0.0
      %1566 = vmatpush2.msra.mxu0 0.0
      %1567 = vmatprep.subr.mxu0 0.0
      %1568 = vmatpush2.msra.mxu0 0.0
      %1569 = vmatprep.subr.mxu0 0.0
      %1570 = vmatpush2.msra.mxu0 0.0
      %1571 = vmatprep.subr.mxu0 0.0
      %1572 = vmatpush2.msra.mxu0 0.0
      %1573 = vmatprep.subr.mxu0 0.0
      %1574 = vmatpush2.msra.mxu0 0.0
      %1575 = vmatprep.subr.mxu0 0.0
      %1576 = vmatpush2.msra.mxu0 0.0
      %1577 = vmatprep.subr.mxu0 0.0
      %1578 = vmatpush2.msra.mxu0 0.0
      %1579 = vmatprep.subr.mxu0 0.0
      %1580 = vmatpush2.msra.mxu0 0.0
      %1581 = vmatprep.subr.mxu0 0.0
      %1582 = vmatpush2.msra.mxu0 0.0
      %1583 = vmatprep.subr.mxu0 0.0
      %1584 = vmatpush2.msra.mxu0 0.0
      %1585 = vmatprep.subr.mxu0 0.0
      %1586 = vmatpush2.msra.mxu0 0.0
      %1587 = vmatprep.subr.mxu0 0.0
      %1588 = vmatpush2.msra.mxu0 0.0
      %1589 = vmatprep.subr.mxu0 0.0
      %1590 = vmatpush2.msra.mxu0 0.0
      %1591 = vmatprep.subr.mxu0 0.0
      %1592 = vmatpush2.msra.mxu0 0.0
      %1593 = vmatprep.subr.mxu0 0.0
      %1594 = vmatpush2.msra.mxu0 0.0
      %1595 = vmatprep.mubr.f32.mxu0 0.0
      %1596 = vmatmul.mubr.f32.gmra.mxu0 %v1420
      %v1597 = vpop.f32.mrf.mxu0
      %v1598 = vadd.f32 %v1528, %v1597
      %v1599 = vpop.f32.mrf.mxu0
      %1600 = vdwg.mxu0
      %s1601 = scalar_lea.vmem %s3, 256
      %v1602 = vld [vmem:[%s1601] sm:$0xff]
      %v1603 = vld [vmem:[%s1601 + $0x8] sm:$0xff]
      %v1604 = vld [vmem:[%s1601 + $0x10] sm:$0xff]
      %v1605 = vld [vmem:[%s1601 + $0x18] sm:$0xff]
      %v1606 = vld [vmem:[%s1601 + $0x20] sm:$0xff]
      %v1607 = vld [vmem:[%s1601 + $0x28] sm:$0xff]
      %v1608 = vld [vmem:[%s1601 + $0x30] sm:$0xff]
      %v1609 = vld [vmem:[%s1601 + $0x38] sm:$0xff]
      %v1610 = vld [vmem:[%s1601 + $0x40] sm:$0xff]
      %v1611 = vld [vmem:[%s1601 + $0x48] sm:$0xff]
      %v1612 = vld [vmem:[%s1601 + $0x50] sm:$0xff]
      %v1613 = vld [vmem:[%s1601 + $0x58] sm:$0xff]
      %v1614 = vld [vmem:[%s1601 + $0x60] sm:$0xff]
      %v1615 = vld [vmem:[%s1601 + $0x68] sm:$0xff]
      %v1616 = vld [vmem:[%s1601 + $0x70] sm:$0xff]
      %v1617 = vld [vmem:[%s1601 + $0x78] sm:$0xff]
      %v1618 = vrot.slane %v1420, 2
      %v1619 = vrot.slane %v1421, 2
      %v1620 = vsel %vm668, %v1618, %v1619
      %1622 = vmatprep.subr.mxu0 0.0
      %1623 = vmatpush1.msra.mxu0 %v1617
      %1624 = vmatprep.subr.mxu0 0.0
      %1625 = vmatpush1.msra.mxu0 %v1616
      %1626 = vmatprep.subr.mxu0 0.0
      %1627 = vmatpush1.msra.mxu0 %v1615
      %1628 = vmatprep.subr.mxu0 0.0
      %1629 = vmatpush1.msra.mxu0 %v1614
      %1630 = vmatprep.subr.mxu0 0.0
      %1631 = vmatpush1.msra.mxu0 %v1613
      %1632 = vmatprep.subr.mxu0 0.0
      %1633 = vmatpush1.msra.mxu0 %v1612
      %1634 = vmatprep.subr.mxu0 0.0
      %1635 = vmatpush1.msra.mxu0 %v1611
      %1636 = vmatprep.subr.mxu0 0.0
      %1637 = vmatpush1.msra.mxu0 %v1610
      %1638 = vmatprep.subr.mxu0 0.0
      %1639 = vmatpush1.msra.mxu0 %v1609
      %1640 = vmatprep.subr.mxu0 0.0
      %1641 = vmatpush1.msra.mxu0 %v1608
      %1642 = vmatprep.subr.mxu0 0.0
      %1643 = vmatpush1.msra.mxu0 %v1607
      %1644 = vmatprep.subr.mxu0 0.0
      %1645 = vmatpush1.msra.mxu0 %v1606
      %1646 = vmatprep.subr.mxu0 0.0
      %1647 = vmatpush1.msra.mxu0 %v1605
      %1648 = vmatprep.subr.mxu0 0.0
      %1649 = vmatpush1.msra.mxu0 %v1604
      %1650 = vmatprep.subr.mxu0 0.0
      %1651 = vmatpush1.msra.mxu0 %v1603
      %1652 = vmatprep.subr.mxu0 0.0
      %1653 = vmatpush1.msra.mxu0 %v1602
      %1654 = vmatprep.subr.mxu0 0.0
      %1655 = vmatpush2.msra.mxu0 0.0
      %1656 = vmatprep.subr.mxu0 0.0
      %1657 = vmatpush2.msra.mxu0 0.0
      %1658 = vmatprep.subr.mxu0 0.0
      %1659 = vmatpush2.msra.mxu0 0.0
      %1660 = vmatprep.subr.mxu0 0.0
      %1661 = vmatpush2.msra.mxu0 0.0
      %1662 = vmatprep.subr.mxu0 0.0
      %1663 = vmatpush2.msra.mxu0 0.0
      %1664 = vmatprep.subr.mxu0 0.0
      %1665 = vmatpush2.msra.mxu0 0.0
      %1666 = vmatprep.subr.mxu0 0.0
      %1667 = vmatpush2.msra.mxu0 0.0
      %1668 = vmatprep.subr.mxu0 0.0
      %1669 = vmatpush2.msra.mxu0 0.0
      %1670 = vmatprep.subr.mxu0 0.0
      %1671 = vmatpush2.msra.mxu0 0.0
      %1672 = vmatprep.subr.mxu0 0.0
      %1673 = vmatpush2.msra.mxu0 0.0
      %1674 = vmatprep.subr.mxu0 0.0
      %1675 = vmatpush2.msra.mxu0 0.0
      %1676 = vmatprep.subr.mxu0 0.0
      %1677 = vmatpush2.msra.mxu0 0.0
      %1678 = vmatprep.subr.mxu0 0.0
      %1679 = vmatpush2.msra.mxu0 0.0
      %1680 = vmatprep.subr.mxu0 0.0
      %1681 = vmatpush2.msra.mxu0 0.0
      %1682 = vmatprep.subr.mxu0 0.0
      %1683 = vmatpush2.msra.mxu0 0.0
      %1684 = vmatprep.subr.mxu0 0.0
      %1685 = vmatpush2.msra.mxu0 0.0
      %1686 = vmatprep.mubr.f32.mxu0 0.0
      %1687 = vmatmul.mubr.f32.gmra.mxu0 %v1620
      %v1688 = vpop.f32.mrf.mxu0
      %v1689 = vadd.f32 0.0, %v1688
      %v1690 = vpop.f32.mrf.mxu0
      %1691 = vdwg.mxu0
      %v1692 = vadd.f32 %v1598, %v1689
      %s1693 = scalar_lea.vmem %s3, 384
      %v1694 = vld [vmem:[%s1693] sm:$0xff]
      %v1695 = vld [vmem:[%s1693 + $0x8] sm:$0xff]
      %v1696 = vld [vmem:[%s1693 + $0x10] sm:$0xff]
      %v1697 = vld [vmem:[%s1693 + $0x18] sm:$0xff]
      %v1698 = vld [vmem:[%s1693 + $0x20] sm:$0xff]
      %v1699 = vld [vmem:[%s1693 + $0x28] sm:$0xff]
      %v1700 = vld [vmem:[%s1693 + $0x30] sm:$0xff]
      %v1701 = vld [vmem:[%s1693 + $0x38] sm:$0xff]
      %v1702 = vld [vmem:[%s1693 + $0x40] sm:$0xff]
      %v1703 = vld [vmem:[%s1693 + $0x48] sm:$0xff]
      %v1704 = vld [vmem:[%s1693 + $0x50] sm:$0xff]
      %v1705 = vld [vmem:[%s1693 + $0x58] sm:$0xff]
      %v1706 = vld [vmem:[%s1693 + $0x60] sm:$0xff]
      %v1707 = vld [vmem:[%s1693 + $0x68] sm:$0xff]
      %v1708 = vld [vmem:[%s1693 + $0x70] sm:$0xff]
      %v1709 = vld [vmem:[%s1693 + $0x78] sm:$0xff]
      %vm1710 = vcmask 1044480
      %v1711 = vrot.slane %v1420, 3
      %v1712 = vrot.slane %v1421, 3
      %v1713 = vsel %vm1710, %v1711, %v1712
      %1715 = vmatprep.subr.mxu0 0.0
      %1716 = vmatpush1.msra.mxu0 %v1709
      %1717 = vmatprep.subr.mxu0 0.0
      %1718 = vmatpush1.msra.mxu0 %v1708
      %1719 = vmatprep.subr.mxu0 0.0
      %1720 = vmatpush1.msra.mxu0 %v1707
      %1721 = vmatprep.subr.mxu0 0.0
      %1722 = vmatpush1.msra.mxu0 %v1706
      %1723 = vmatprep.subr.mxu0 0.0
      %1724 = vmatpush1.msra.mxu0 %v1705
      %1725 = vmatprep.subr.mxu0 0.0
      %1726 = vmatpush1.msra.mxu0 %v1704
      %1727 = vmatprep.subr.mxu0 0.0
      %1728 = vmatpush1.msra.mxu0 %v1703
      %1729 = vmatprep.subr.mxu0 0.0
      %1730 = vmatpush1.msra.mxu0 %v1702
      %1731 = vmatprep.subr.mxu0 0.0
      %1732 = vmatpush1.msra.mxu0 %v1701
      %1733 = vmatprep.subr.mxu0 0.0
      %1734 = vmatpush1.msra.mxu0 %v1700
      %1735 = vmatprep.subr.mxu0 0.0
      %1736 = vmatpush1.msra.mxu0 %v1699
      %1737 = vmatprep.subr.mxu0 0.0
      %1738 = vmatpush1.msra.mxu0 %v1698
      %1739 = vmatprep.subr.mxu0 0.0
      %1740 = vmatpush1.msra.mxu0 %v1697
      %1741 = vmatprep.subr.mxu0 0.0
      %1742 = vmatpush1.msra.mxu0 %v1696
      %1743 = vmatprep.subr.mxu0 0.0
      %1744 = vmatpush1.msra.mxu0 %v1695
      %1745 = vmatprep.subr.mxu0 0.0
      %1746 = vmatpush1.msra.mxu0 %v1694
      %1747 = vmatprep.subr.mxu0 0.0
      %1748 = vmatpush2.msra.mxu0 0.0
      %1749 = vmatprep.subr.mxu0 0.0
      %1750 = vmatpush2.msra.mxu0 0.0
      %1751 = vmatprep.subr.mxu0 0.0
      %1752 = vmatpush2.msra.mxu0 0.0
      %1753 = vmatprep.subr.mxu0 0.0
      %1754 = vmatpush2.msra.mxu0 0.0
      %1755 = vmatprep.subr.mxu0 0.0
      %1756 = vmatpush2.msra.mxu0 0.0
      %1757 = vmatprep.subr.mxu0 0.0
      %1758 = vmatpush2.msra.mxu0 0.0
      %1759 = vmatprep.subr.mxu0 0.0
      %1760 = vmatpush2.msra.mxu0 0.0
      %1761 = vmatprep.subr.mxu0 0.0
      %1762 = vmatpush2.msra.mxu0 0.0
      %1763 = vmatprep.subr.mxu0 0.0
      %1764 = vmatpush2.msra.mxu0 0.0
      %1765 = vmatprep.subr.mxu0 0.0
      %1766 = vmatpush2.msra.mxu0 0.0
      %1767 = vmatprep.subr.mxu0 0.0
      %1768 = vmatpush2.msra.mxu0 0.0
      %1769 = vmatprep.subr.mxu0 0.0
      %1770 = vmatpush2.msra.mxu0 0.0
      %1771 = vmatprep.subr.mxu0 0.0
      %1772 = vmatpush2.msra.mxu0 0.0
      %1773 = vmatprep.subr.mxu0 0.0
      %1774 = vmatpush2.msra.mxu0 0.0
      %1775 = vmatprep.subr.mxu0 0.0
      %1776 = vmatpush2.msra.mxu0 0.0
      %1777 = vmatprep.subr.mxu0 0.0
      %1778 = vmatpush2.msra.mxu0 0.0
      %1779 = vmatprep.mubr.f32.mxu0 0.0
      %1780 = vmatmul.mubr.f32.gmra.mxu0 %v1713
      %v1781 = vpop.f32.mrf.mxu0
      %v1782 = vadd.f32 0.0, %v1781
      %v1783 = vpop.f32.mrf.mxu0
      %1784 = vdwg.mxu0
      %v1785 = vadd.f32 %v1692, %v1782
      %s1786 = scalar_lea.vmem %s3, 512
      %v1787 = vld [vmem:[%s1786] sm:$0xff]
      %v1788 = vld [vmem:[%s1786 + $0x8] sm:$0xff]
      %v1789 = vld [vmem:[%s1786 + $0x10] sm:$0xff]
      %v1790 = vld [vmem:[%s1786 + $0x18] sm:$0xff]
      %v1791 = vld [vmem:[%s1786 + $0x20] sm:$0xff]
      %v1792 = vld [vmem:[%s1786 + $0x28] sm:$0xff]
      %v1793 = vld [vmem:[%s1786 + $0x30] sm:$0xff]
      %v1794 = vld [vmem:[%s1786 + $0x38] sm:$0xff]
      %v1795 = vld [vmem:[%s1786 + $0x40] sm:$0xff]
      %v1796 = vld [vmem:[%s1786 + $0x48] sm:$0xff]
      %v1797 = vld [vmem:[%s1786 + $0x50] sm:$0xff]
      %v1798 = vld [vmem:[%s1786 + $0x58] sm:$0xff]
      %v1799 = vld [vmem:[%s1786 + $0x60] sm:$0xff]
      %v1800 = vld [vmem:[%s1786 + $0x68] sm:$0xff]
      %v1801 = vld [vmem:[%s1786 + $0x70] sm:$0xff]
      %v1802 = vld [vmem:[%s1786 + $0x78] sm:$0xff]
      %vm1803 = vcmask 1043456
      %v1804 = vrot.slane %v1420, 4
      %v1805 = vrot.slane %v1421, 4
      %v1806 = vsel %vm1803, %v1804, %v1805
      %1808 = vmatprep.subr.mxu0 0.0
      %1809 = vmatpush1.msra.mxu0 %v1802
      %1810 = vmatprep.subr.mxu0 0.0
      %1811 = vmatpush1.msra.mxu0 %v1801
      %1812 = vmatprep.subr.mxu0 0.0
      %1813 = vmatpush1.msra.mxu0 %v1800
      %1814 = vmatprep.subr.mxu0 0.0
      %1815 = vmatpush1.msra.mxu0 %v1799
      %1816 = vmatprep.subr.mxu0 0.0
      %1817 = vmatpush1.msra.mxu0 %v1798
      %1818 = vmatprep.subr.mxu0 0.0
      %1819 = vmatpush1.msra.mxu0 %v1797
      %1820 = vmatprep.subr.mxu0 0.0
      %1821 = vmatpush1.msra.mxu0 %v1796
      %1822 = vmatprep.subr.mxu0 0.0
      %1823 = vmatpush1.msra.mxu0 %v1795
      %1824 = vmatprep.subr.mxu0 0.0
      %1825 = vmatpush1.msra.mxu0 %v1794
      %1826 = vmatprep.subr.mxu0 0.0
      %1827 = vmatpush1.msra.mxu0 %v1793
      %1828 = vmatprep.subr.mxu0 0.0
      %1829 = vmatpush1.msra.mxu0 %v1792
      %1830 = vmatprep.subr.mxu0 0.0
      %1831 = vmatpush1.msra.mxu0 %v1791
      %1832 = vmatprep.subr.mxu0 0.0
      %1833 = vmatpush1.msra.mxu0 %v1790
      %1834 = vmatprep.subr.mxu0 0.0
      %1835 = vmatpush1.msra.mxu0 %v1789
      %1836 = vmatprep.subr.mxu0 0.0
      %1837 = vmatpush1.msra.mxu0 %v1788
      %1838 = vmatprep.subr.mxu0 0.0
      %1839 = vmatpush1.msra.mxu0 %v1787
      %1840 = vmatprep.subr.mxu0 0.0
      %1841 = vmatpush2.msra.mxu0 0.0
      %1842 = vmatprep.subr.mxu0 0.0
      %1843 = vmatpush2.msra.mxu0 0.0
      %1844 = vmatprep.subr.mxu0 0.0
      %1845 = vmatpush2.msra.mxu0 0.0
      %1846 = vmatprep.subr.mxu0 0.0
      %1847 = vmatpush2.msra.mxu0 0.0
      %1848 = vmatprep.subr.mxu0 0.0
      %1849 = vmatpush2.msra.mxu0 0.0
      %1850 = vmatprep.subr.mxu0 0.0
      %1851 = vmatpush2.msra.mxu0 0.0
      %1852 = vmatprep.subr.mxu0 0.0
      %1853 = vmatpush2.msra.mxu0 0.0
      %1854 = vmatprep.subr.mxu0 0.0
      %1855 = vmatpush2.msra.mxu0 0.0
      %1856 = vmatprep.subr.mxu0 0.0
      %1857 = vmatpush2.msra.mxu0 0.0
      %1858 = vmatprep.subr.mxu0 0.0
      %1859 = vmatpush2.msra.mxu0 0.0
      %1860 = vmatprep.subr.mxu0 0.0
      %1861 = vmatpush2.msra.mxu0 0.0
      %1862 = vmatprep.subr.mxu0 0.0
      %1863 = vmatpush2.msra.mxu0 0.0
      %1864 = vmatprep.subr.mxu0 0.0
      %1865 = vmatpush2.msra.mxu0 0.0
      %1866 = vmatprep.subr.mxu0 0.0
      %1867 = vmatpush2.msra.mxu0 0.0
      %1868 = vmatprep.subr.mxu0 0.0
      %1869 = vmatpush2.msra.mxu0 0.0
      %1870 = vmatprep.subr.mxu0 0.0
      %1871 = vmatpush2.msra.mxu0 0.0
      %1872 = vmatprep.mubr.f32.mxu0 0.0
      %1873 = vmatmul.mubr.f32.gmra.mxu0 %v1806
      %v1874 = vpop.f32.mrf.mxu0
      %v1875 = vadd.f32 0.0, %v1874
      %v1876 = vpop.f32.mrf.mxu0
      %1877 = vdwg.mxu0
      %v1878 = vadd.f32 %v1785, %v1875
      %s1879 = scalar_lea.vmem %s3, 640
      %v1880 = vld [vmem:[%s1879] sm:$0xff]
      %v1881 = vld [vmem:[%s1879 + $0x8] sm:$0xff]
      %v1882 = vld [vmem:[%s1879 + $0x10] sm:$0xff]
      %v1883 = vld [vmem:[%s1879 + $0x18] sm:$0xff]
      %v1884 = vld [vmem:[%s1879 + $0x20] sm:$0xff]
      %v1885 = vld [vmem:[%s1879 + $0x28] sm:$0xff]
      %v1886 = vld [vmem:[%s1879 + $0x30] sm:$0xff]
      %v1887 = vld [vmem:[%s1879 + $0x38] sm:$0xff]
      %v1888 = vld [vmem:[%s1879 + $0x40] sm:$0xff]
      %v1889 = vld [vmem:[%s1879 + $0x48] sm:$0xff]
      %v1890 = vld [vmem:[%s1879 + $0x50] sm:$0xff]
      %v1891 = vld [vmem:[%s1879 + $0x58] sm:$0xff]
      %v1892 = vld [vmem:[%s1879 + $0x60] sm:$0xff]
      %v1893 = vld [vmem:[%s1879 + $0x68] sm:$0xff]
      %v1894 = vld [vmem:[%s1879 + $0x70] sm:$0xff]
      %v1895 = vld [vmem:[%s1879 + $0x78] sm:$0xff]
      %v1896 = vrot.slane %v1420, 5
      %v1897 = vrot.slane %v1421, 5
      %v1898 = vsel %vm1419, %v1896, %v1897
      %1900 = vmatprep.subr.mxu0 0.0
      %1901 = vmatpush1.msra.mxu0 %v1895
      %1902 = vmatprep.subr.mxu0 0.0
      %1903 = vmatpush1.msra.mxu0 %v1894
      %1904 = vmatprep.subr.mxu0 0.0
      %1905 = vmatpush1.msra.mxu0 %v1893
      %1906 = vmatprep.subr.mxu0 0.0
      %1907 = vmatpush1.msra.mxu0 %v1892
      %1908 = vmatprep.subr.mxu0 0.0
      %1909 = vmatpush1.msra.mxu0 %v1891
      %1910 = vmatprep.subr.mxu0 0.0
      %1911 = vmatpush1.msra.mxu0 %v1890
      %1912 = vmatprep.subr.mxu0 0.0
      %1913 = vmatpush1.msra.mxu0 %v1889
      %1914 = vmatprep.subr.mxu0 0.0
      %1915 = vmatpush1.msra.mxu0 %v1888
      %1916 = vmatprep.subr.mxu0 0.0
      %1917 = vmatpush1.msra.mxu0 %v1887
      %1918 = vmatprep.subr.mxu0 0.0
      %1919 = vmatpush1.msra.mxu0 %v1886
      %1920 = vmatprep.subr.mxu0 0.0
      %1921 = vmatpush1.msra.mxu0 %v1885
      %1922 = vmatprep.subr.mxu0 0.0
      %1923 = vmatpush1.msra.mxu0 %v1884
      %1924 = vmatprep.subr.mxu0 0.0
      %1925 = vmatpush1.msra.mxu0 %v1883
      %1926 = vmatprep.subr.mxu0 0.0
      %1927 = vmatpush1.msra.mxu0 %v1882
      %1928 = vmatprep.subr.mxu0 0.0
      %1929 = vmatpush1.msra.mxu0 %v1881
      %1930 = vmatprep.subr.mxu0 0.0
      %1931 = vmatpush1.msra.mxu0 %v1880
      %1932 = vmatprep.subr.mxu0 0.0
      %1933 = vmatpush2.msra.mxu0 0.0
      %1934 = vmatprep.subr.mxu0 0.0
      %1935 = vmatpush2.msra.mxu0 0.0
      %1936 = vmatprep.subr.mxu0 0.0
      %1937 = vmatpush2.msra.mxu0 0.0
      %1938 = vmatprep.subr.mxu0 0.0
      %1939 = vmatpush2.msra.mxu0 0.0
      %1940 = vmatprep.subr.mxu0 0.0
      %1941 = vmatpush2.msra.mxu0 0.0
      %1942 = vmatprep.subr.mxu0 0.0
      %1943 = vmatpush2.msra.mxu0 0.0
      %1944 = vmatprep.subr.mxu0 0.0
      %1945 = vmatpush2.msra.mxu0 0.0
      %1946 = vmatprep.subr.mxu0 0.0
      %1947 = vmatpush2.msra.mxu0 0.0
      %1948 = vmatprep.subr.mxu0 0.0
      %1949 = vmatpush2.msra.mxu0 0.0
      %1950 = vmatprep.subr.mxu0 0.0
      %1951 = vmatpush2.msra.mxu0 0.0
      %1952 = vmatprep.subr.mxu0 0.0
      %1953 = vmatpush2.msra.mxu0 0.0
      %1954 = vmatprep.subr.mxu0 0.0
      %1955 = vmatpush2.msra.mxu0 0.0
      %1956 = vmatprep.subr.mxu0 0.0
      %1957 = vmatpush2.msra.mxu0 0.0
      %1958 = vmatprep.subr.mxu0 0.0
      %1959 = vmatpush2.msra.mxu0 0.0
      %1960 = vmatprep.subr.mxu0 0.0
      %1961 = vmatpush2.msra.mxu0 0.0
      %1962 = vmatprep.subr.mxu0 0.0
      %1963 = vmatpush2.msra.mxu0 0.0
      %1964 = vmatprep.mubr.f32.mxu0 0.0
      %1965 = vmatmul.mubr.f32.gmra.mxu0 %v1898
      %v1966 = vpop.f32.mrf.mxu0
      %v1967 = vadd.f32 0.0, %v1966
      %v1968 = vpop.f32.mrf.mxu0
      %1969 = vdwg.mxu0
      %v1970 = vadd.f32 %v1878, %v1967
      %s1971 = scalar_lea.vmem %s3, 768
      %v1972 = vld [vmem:[%s1971] sm:$0xff]
      %v1973 = vld [vmem:[%s1971 + $0x8] sm:$0xff]
      %v1974 = vld [vmem:[%s1971 + $0x10] sm:$0xff]
      %v1975 = vld [vmem:[%s1971 + $0x18] sm:$0xff]
      %v1976 = vld [vmem:[%s1971 + $0x20] sm:$0xff]
      %v1977 = vld [vmem:[%s1971 + $0x28] sm:$0xff]
      %v1978 = vld [vmem:[%s1971 + $0x30] sm:$0xff]
      %v1979 = vld [vmem:[%s1971 + $0x38] sm:$0xff]
      %v1980 = vld [vmem:[%s1971 + $0x40] sm:$0xff]
      %v1981 = vld [vmem:[%s1971 + $0x48] sm:$0xff]
      %v1982 = vld [vmem:[%s1971 + $0x50] sm:$0xff]
      %v1983 = vld [vmem:[%s1971 + $0x58] sm:$0xff]
      %v1984 = vld [vmem:[%s1971 + $0x60] sm:$0xff]
      %v1985 = vld [vmem:[%s1971 + $0x68] sm:$0xff]
      %v1986 = vld [vmem:[%s1971 + $0x70] sm:$0xff]
      %v1987 = vld [vmem:[%s1971 + $0x78] sm:$0xff]
      %vm1988 = vcmask 1041408
      %v1989 = vrot.slane %v1420, 6
      %v1990 = vrot.slane %v1421, 6
      %v1991 = vsel %vm1988, %v1989, %v1990
      %1993 = vmatprep.subr.mxu0 0.0
      %1994 = vmatpush1.msra.mxu0 %v1987
      %1995 = vmatprep.subr.mxu0 0.0
      %1996 = vmatpush1.msra.mxu0 %v1986
      %1997 = vmatprep.subr.mxu0 0.0
      %1998 = vmatpush1.msra.mxu0 %v1985
      %1999 = vmatprep.subr.mxu0 0.0
      %2000 = vmatpush1.msra.mxu0 %v1984
      %2001 = vmatprep.subr.mxu0 0.0
      %2002 = vmatpush1.msra.mxu0 %v1983
      %2003 = vmatprep.subr.mxu0 0.0
      %2004 = vmatpush1.msra.mxu0 %v1982
      %2005 = vmatprep.subr.mxu0 0.0
      %2006 = vmatpush1.msra.mxu0 %v1981
      %2007 = vmatprep.subr.mxu0 0.0
      %2008 = vmatpush1.msra.mxu0 %v1980
      %2009 = vmatprep.subr.mxu0 0.0
      %2010 = vmatpush1.msra.mxu0 %v1979
      %2011 = vmatprep.subr.mxu0 0.0
      %2012 = vmatpush1.msra.mxu0 %v1978
      %2013 = vmatprep.subr.mxu0 0.0
      %2014 = vmatpush1.msra.mxu0 %v1977
      %2015 = vmatprep.subr.mxu0 0.0
      %2016 = vmatpush1.msra.mxu0 %v1976
      %2017 = vmatprep.subr.mxu0 0.0
      %2018 = vmatpush1.msra.mxu0 %v1975
      %2019 = vmatprep.subr.mxu0 0.0
      %2020 = vmatpush1.msra.mxu0 %v1974
      %2021 = vmatprep.subr.mxu0 0.0
      %2022 = vmatpush1.msra.mxu0 %v1973
      %2023 = vmatprep.subr.mxu0 0.0
      %2024 = vmatpush1.msra.mxu0 %v1972
      %2025 = vmatprep.subr.mxu0 0.0
      %2026 = vmatpush2.msra.mxu0 0.0
      %2027 = vmatprep.subr.mxu0 0.0
      %2028 = vmatpush2.msra.mxu0 0.0
      %2029 = vmatprep.subr.mxu0 0.0
      %2030 = vmatpush2.msra.mxu0 0.0
      %2031 = vmatprep.subr.mxu0 0.0
      %2032 = vmatpush2.msra.mxu0 0.0
      %2033 = vmatprep.subr.mxu0 0.0
      %2034 = vmatpush2.msra.mxu0 0.0
      %2035 = vmatprep.subr.mxu0 0.0
      %2036 = vmatpush2.msra.mxu0 0.0
      %2037 = vmatprep.subr.mxu0 0.0
      %2038 = vmatpush2.msra.mxu0 0.0
      %2039 = vmatprep.subr.mxu0 0.0
      %2040 = vmatpush2.msra.mxu0 0.0
      %2041 = vmatprep.subr.mxu0 0.0
      %2042 = vmatpush2.msra.mxu0 0.0
      %2043 = vmatprep.subr.mxu0 0.0
      %2044 = vmatpush2.msra.mxu0 0.0
      %2045 = vmatprep.subr.mxu0 0.0
      %2046 = vmatpush2.msra.mxu0 0.0
      %2047 = vmatprep.subr.mxu0 0.0
      %2048 = vmatpush2.msra.mxu0 0.0
      %2049 = vmatprep.subr.mxu0 0.0
      %2050 = vmatpush2.msra.mxu0 0.0
      %2051 = vmatprep.subr.mxu0 0.0
      %2052 = vmatpush2.msra.mxu0 0.0
      %2053 = vmatprep.subr.mxu0 0.0
      %2054 = vmatpush2.msra.mxu0 0.0
      %2055 = vmatprep.subr.mxu0 0.0
      %2056 = vmatpush2.msra.mxu0 0.0
      %2057 = vmatprep.mubr.f32.mxu0 0.0
      %2058 = vmatmul.mubr.f32.gmra.mxu0 %v1991
      %v2059 = vpop.f32.mrf.mxu0
      %v2060 = vadd.f32 0.0, %v2059
      %v2061 = vpop.f32.mrf.mxu0
      %2062 = vdwg.mxu0
      %v2063 = vadd.f32 %v1970, %v2060
      %v2064 = vxor.u32 %v2063, 2147483648
      %v2065 = vmul.f32 %v2064, 1.442695
      %v2066 = vpow.pop %v2065
      %v2067 = vadd.f32 %v2066, 1.0
      %v2068 = vrcp.pop %v2067
      %v2069 = vmul.f32 1.0, %v2068
      %v2070 = vmul.f32 %v1377, %v2069
      %v2071 = vadd.f32 %v2070, %v306
      %v2072 = vmax.f32 %v2071, 0.0
      %2074 = vrot.lane.b32.xlu0 %v2069, 64
      %v2075 = vpop.permute.xlu0 %2074
      %v2077 = vmul.f32 %v1383, %v2075
      %v2078 = vadd.f32 %v2077, %v306
      %v2079 = vmax.f32 %v2078, 0.0
      %v2080 = vmul.f32 %v1389, %v2069
      %v2081 = vadd.f32 %v2080, %v307
      %v2082 = vmax.f32 %v2081, 0.0
      %v2083 = vmul.f32 %v1395, %v2075
      %v2084 = vadd.f32 %v2083, %v307
      %v2085 = vmax.f32 %v2084, 0.0
      %v2086 = vsel %vm1221, %v2072, %v2079
      %v2087 = vsel %vm1221, %v2082, %v2085
      %2088 = vst [vmem:[%s305] sm:$0xff] %v2086
      %2089 = vst [vmem:[%s305 + $0x8] sm:$0xff] %v2087
      %p2090 = scmp.lt.s32.totalorder %s19, 1
      %s2091 = scalar_select %p2090, %s19, 1
      %s2092 = smul.addr %s2091, 2
      %s2093 = smul.addr %s2092, 8
      %s2094 = scalar_lea.vmem %s8, %s2093
      // Predicated region
      $region53: #{basic_block_forward.1} parent=51 // pred_check
        %p2095 = pneg %p210
      $region54: #{basic_block_forward.1} parent=51 // pred_check_branch
        %2097 = sbr.rel (%p2095) target = $region56
      $region55: #{basic_block_forward.1} parent=51 // pred_region
        _
      $region56: #{basic_block_forward.1} parent=51 // pred_fallthru
        _
    $region52: #{basic_block_forward.1} parent=5 // pred_fallthru
      _
    %p2098 = scmp.le.s32.totalorder 2, %s14
    // Predicated region
    $region57: #{basic_block_forward.1} parent=5 // pred_check
      %p2099 = pneg %p2098
    $region58: #{basic_block_forward.1} parent=5 // pred_check_branch
      %2101 = sbr.rel (%p2099) target = $region60
    $region59: #{basic_block_forward.1} parent=5 // pred_region
      %s2102 = ssub.s32 %s14, 2
      // Predicated region
      $region61: #{basic_block_forward.1} parent=59 // pred_check
        %p2103 = pneg %p216
      $region62: #{basic_block_forward.1} parent=59 // pred_check_branch
        %2105 = sbr.rel (%p2103) target = $region64
      $region63: #{basic_block_forward.1} parent=59 // pred_region
        %p2106 = scmp.lt.s32.totalorder %s20, 1
        %s2107 = scalar_select %p2106, %s20, 1
        %s2108 = smul.addr %s2107, 2
        %s2109 = smul.addr %s2108, 8
        %s2110 = scalar_lea.vmem %s8, %s2109
      $region64: #{basic_block_forward.1} parent=59 // pred_fallthru
        _
    $region60: #{basic_block_forward.1} parent=5 // pred_fallthru
      _
  $region6: #{basic_block_forward.1} parent=0 // loop_footer
    %s18 = sadd.s32 1, %s14
  $region7: #{basic_block_forward.1} parent=0 // loop_footer_branch
    %13 = sbr.rel target = $region3
  $region8: #{basic_block_forward.1} parent=0 // loop_exit
    _

</llo_original>
